<compile_context>
chip_gen: v5e
topology: v5e:2x2
jax: 0.10.0
libtpu: 0.0.40
codegen_flags: <defaults>
</compile_context>

<pallas_src>
import jax
import jax.numpy as jnp
import numpy as np
from jax.experimental import pallas as pl
from jax.experimental.pallas import tpu as pltpu

EPS = 1e-5


# ----------------------------------------------------------------------------
# Block schedule & BN folding (host-side glue)
# ----------------------------------------------------------------------------
def block_schedule(cfg):
    """Dilation + 'end of DTCStack' flag for every DTCBlock in exec order."""
    dils = [1]                       # preprocessing_tdc (dilation 1)
    ends = [False]
    for _ in range(cfg['stack_num']):
        for i in range(cfg['stack_size']):
            dils.append(2 ** i)
            ends.append(i == cfg['stack_size'] - 1)
    return dils, ends


def _bn_scale_shift(g, b, rm, rv):
    s = g / jnp.sqrt(rv + EPS)
    return s, b - rm * s


def fold_block_params(p):
    """Fold eval-mode BatchNorm1d into the adjacent conv weights / biases."""
    s1, o1 = _bn_scale_shift(p['g1'], p['b1'], p['rm1'], p['rv1'])
    s2, o2 = _bn_scale_shift(p['g2'], p['b2'], p['rm2'], p['rv2'])
    s3, o3 = _bn_scale_shift(p['g3'], p['b3'], p['rm3'], p['rv3'])
    wdw = p['wdw'] * s1[:, None]          # (C, K)
    ba = s1 * p['bdw'] + o1               # (C,)
    W1 = p['W1'] * s2[:, None]            # (C, C)
    b1 = s2 * p['bW1'] + o2               # (C,)
    W2 = p['W2'] * s3[:, None]            # (C, C)
    b2 = s3 * p['bW2'] + o3               # (C,)
    return wdw, ba, W1, b1, W2, b2


def pack_weights(params, cfg, has_proj, wcols):
    """One bf16 (NBW, C, wcols) array: [proj row?] + per-block W1|W2|taps|biases."""
    C, K, F = cfg['out_channels'], cfg['kernel_size'], cfg['in_channels']
    blocks = [params['pre']] + [params['stack'][si][bi]
                                for si in range(cfg['stack_num'])
                                for bi in range(cfg['stack_size'])]
    rows = []
    if has_proj:
        r = jnp.zeros((C, wcols), jnp.float32)
        r = r.at[:, :F].set(params['linW'])
        r = r.at[:, F].set(params['linb'])
        rows.append(r)
    for p in blocks:
        wdw, ba, W1, b1, W2, b2 = fold_block_params(p)
        r = jnp.zeros((C, wcols), jnp.float32)
        r = r.at[:, :C].set(W1)
        r = r.at[:, C:2 * C].set(W2)
        r = r.at[:, 2 * C:2 * C + K].set(wdw)
        r = r.at[:, 2 * C + K].set(ba)
        r = r.at[:, 2 * C + K + 1].set(b1)
        r = r.at[:, 2 * C + K + 2].set(b2)
        rows.append(r)
    return jnp.stack(rows).astype(jnp.bfloat16)


# ----------------------------------------------------------------------------
# Fused Pallas kernel: one grid step = B samples, full chain stays in vregs
# ----------------------------------------------------------------------------
def make_mdtc_kernel(F, C, T, B, K, dils, ends, has_proj):
    BT = B * T
    NB = len(dils)
    off = 1 if has_proj else 0
    # distinct nonzero causal shifts used by any block
    shifts = sorted({(K - 1 - k) * d for d in dils for k in range(K)} - {0})

    def kernel(x_ref, w_ref, out_ref):
        # Hoisted loop invariants: per-sample time index and the causal keep
        # masks (one per distinct shift).  JAX does not CSE broadcasts, so
        # these are computed exactly once per invocation.
        col = jax.lax.broadcasted_iota(jnp.int32, (C, BT), 1)
        tmod = (col & (T - 1)) if (T & (T - 1)) == 0 else (col % T)
        keep = {s: tmod >= s for s in shifts}

        if has_proj:
            pw = w_ref[0]                                   # (C, wcols) bf16
            x = (jnp.dot(pw[:, :F], x_ref[0].astype(jnp.bfloat16),
                         preferred_element_type=jnp.float32)
                 + pw[:, F:F + 1].astype(jnp.float32))
        else:
            x = x_ref[0]                                    # (C, BT) f32

        acc = None
        for bi in range(NB):                                # static unroll (5 blocks)
            d = dils[bi]
            wb = w_ref[off + bi]                            # (C, wcols) bf16
            W1 = wb[:, :C]
            W2 = wb[:, C:2 * C]
            taps = wb[:, 2 * C:2 * C + K].astype(jnp.float32)          # (C, K)
            ba = wb[:, 2 * C + K:2 * C + K + 1].astype(jnp.float32)    # (C, 1)
            b1 = wb[:, 2 * C + K + 1:2 * C + K + 2].astype(jnp.float32)
            b2 = wb[:, 2 * C + K + 2:2 * C + K + 3].astype(jnp.float32)

            # depthwise causal dilated conv + folded bn1 (VPU; shifts on XLU)
            y = ba
            for k in range(K):                              # static unroll over taps
                s = (K - 1 - k) * d
                if s == 0:
                    tap = x
                else:
                    # roll toward higher t, zero the wrapped / cross-sample lanes
                    tap = jnp.where(keep[s], pltpu.roll(x, s, axis=1), 0.0)
                y = y + taps[:, k:k + 1] * tap

            # pointwise conv1 + folded bn2 + relu  (MXU, bf16 in / f32 acc)
            z = jnp.dot(W1, y.astype(jnp.bfloat16),
                        preferred_element_type=jnp.float32) + b1
            z = jnp.maximum(z, 0.0)
            # pointwise conv2 + folded bn3 + residual + relu
            w = jnp.dot(W2, z.astype(jnp.bfloat16),
                        preferred_element_type=jnp.float32) + b2
            x = jnp.maximum(w + x, 0.0)

            if ends[bi]:                                    # DTCStack output sum
                acc = x if acc is None else acc + x

        if acc is None:
            acc = jnp.zeros((C, BT), jnp.float32)
        out_ref[0] = acc.astype(out_ref.dtype)

    return kernel


def mdtc_forward_pallas(x4, params, cfg, batch_parallel=None):
    N, _, F, T = x4.shape
    C, K = cfg['out_channels'], cfg['kernel_size']
    x = x4[:, 0]                                            # squeeze(1): (N, F, T)

    dils, ends = block_schedule(cfg)
    NB = len(dils)
    has_proj = (F != C)

    # Single packed bf16 weight array (lane width padded to a 128 multiple).
    wcols = 128 * pl.cdiv(max(2 * C + K + 3, (F + 1) if has_proj else 1), 128)
    wpk = pack_weights(params, cfg, has_proj, wcols)        # (NBW, C, wcols)
    NBW = wpk.shape[0]

    if batch_parallel is None:
        try:
            kind = jax.devices()[0].device_kind.lower()
        except Exception:
            kind = ''
        # v7x has 2 TensorCores per chip -> one sample per core; single-TC
        # chips (v5e/v6e) fold the batch into the matmul columns instead.
        batch_parallel = (N > 1) and ('7' in kind)

    if batch_parallel:
        G, B = N, 1
        x_in = x                                            # (N, F, T)
    else:
        G, B = 1, N
        x_in = x.transpose(1, 0, 2).reshape(1, F, N * T)    # (1, F, N*T)
    BT = B * T

    kernel = make_mdtc_kernel(F, C, T, B, K, dils, ends, has_proj)

    flops = int(N * ((2 * C * F * T if has_proj else 0)
                     + NB * (2 * C * K * T + 2 * (2 * C * C * T) + 5 * C * T)))
    bytes_accessed = int(4 * N * T * (F + C) + 2 * wpk.size)

    out = pl.pallas_call(
        kernel,
        out_shape=jax.ShapeDtypeStruct((G, C, BT), jnp.float32),
        grid=(G,),
        in_specs=[pl.BlockSpec((1, F, BT), lambda n: (n, 0, 0)),
                  pl.BlockSpec((NBW, C, wcols), lambda n: (0, 0, 0))],
        out_specs=pl.BlockSpec((1, C, BT), lambda n: (n, 0, 0)),
        compiler_params=pltpu.CompilerParams(
            dimension_semantics=(("parallel",) if batch_parallel
                                 else ("arbitrary",))),
        cost_estimate=pl.CostEstimate(flops=flops, transcendentals=0,
                                      bytes_accessed=bytes_accessed),
    )(x_in, wpk)

    if batch_parallel:
        return out                                          # (N, C, T)
    return out[0].reshape(C, N, T).transpose(1, 0, 2)       # (N, C, T)


# ----------------------------------------------------------------------------
# Pure-JAX reference (unfused, unfolded BN, f32 HIGHEST) for correctness check
# ----------------------------------------------------------------------------
def _ref_bn(x, g, b, rm, rv):
    return g[None, :, None] * (x - rm[None, :, None]) / jnp.sqrt(rv[None, :, None] + EPS) \
        + b[None, :, None]


def ref_dtc_block(x, p, K, d):
    N, C, T = x.shape
    pad = (K - 1) * d
    xp = jnp.pad(x, ((0, 0), (0, 0), (pad, 0)))
    y = jnp.zeros_like(x)
    for k in range(K):
        y = y + p['wdw'][None, :, k, None] * xp[:, :, k * d:k * d + T]
    y = y + p['bdw'][None, :, None]
    y = _ref_bn(y, p['g1'], p['b1'], p['rm1'], p['rv1'])
    z = jnp.einsum('oc,nct->not', p['W1'], y,
                   precision=jax.lax.Precision.HIGHEST) + p['bW1'][None, :, None]
    z = jax.nn.relu(_ref_bn(z, p['g2'], p['b2'], p['rm2'], p['rv2']))
    w = jnp.einsum('oc,nct->not', p['W2'], z,
                   precision=jax.lax.Precision.HIGHEST) + p['bW2'][None, :, None]
    w = _ref_bn(w, p['g3'], p['b3'], p['rm3'], p['rv3'])
    return jax.nn.relu(w + x)


def mdtc_forward_ref(x4, params, cfg):
    x = x4[:, 0]
    if cfg['in_channels'] != cfg['out_channels']:
        x = jnp.einsum('of,nft->not', params['linW'], x,
                       precision=jax.lax.Precision.HIGHEST) + params['linb'][None, :, None]
    x = ref_dtc_block(x, params['pre'], cfg['kernel_size'], 1)
    out = jnp.zeros_like(x)
    for si in range(cfg['stack_num']):
        for bi in range(cfg['stack_size']):
            x = ref_dtc_block(x, params['stack'][si][bi], cfg['kernel_size'], 2 ** bi)
        out = out + x
    return out


# ----------------------------------------------------------------------------
# Deterministic parameter init (synthetic; shapes follow nn.Module __init__)
# ----------------------------------------------------------------------------
def init_block_params(key, C, K):
    ks = jax.random.split(key, 7)
    p = {
        'wdw': (0.3 * jax.random.normal(ks[0], (C, K))).astype(jnp.float32),
        'bdw': (0.1 * jax.random.normal(ks[1], (C,))).astype(jnp.float32),
        'W1': (0.3 / np.sqrt(C) * jax.random.normal(ks[2], (C, C))).astype(jnp.float32),
        'bW1': (0.1 * jax.random.normal(ks[3], (C,))).astype(jnp.float32),
        'W2': (0.3 / np.sqrt(C) * jax.random.normal(ks[4], (C, C))).astype(jnp.float32),
        'bW2': (0.1 * jax.random.normal(ks[5], (C,))).astype(jnp.float32),
    }
    bnk = jax.random.split(ks[6], 12)
    for i, name in enumerate(('1', '2', '3')):
        p['g' + name] = (1.0 + 0.1 * jax.random.normal(bnk[4 * i], (C,))).astype(jnp.float32)
        p['b' + name] = (0.1 * jax.random.normal(bnk[4 * i + 1], (C,))).astype(jnp.float32)
        p['rm' + name] = (0.1 * jax.random.normal(bnk[4 * i + 2], (C,))).astype(jnp.float32)
        p['rv' + name] = (0.5 + jax.random.uniform(bnk[4 * i + 3], (C,))).astype(jnp.float32)
    return p


def init_mdtc_params(key, cfg):
    F, C, K = cfg['in_channels'], cfg['out_channels'], cfg['kernel_size']
    keys = jax.random.split(key, 3 + cfg['stack_num'] * cfg['stack_size'])
    params = {}
    if F != C:
        params['linW'] = (0.3 / np.sqrt(F) * jax.random.normal(keys[0], (C, F))).astype(jnp.float32)
        params['linb'] = (0.1 * jax.random.normal(keys[1], (C,))).astype(jnp.float32)
    params['pre'] = init_block_params(keys[2], C, K)
    params['stack'] = []
    idx = 3
    for _ in range(cfg['stack_num']):
        blocks = []
        for _ in range(cfg['stack_size']):
            blocks.append(init_block_params(keys[idx], C, K))
            idx += 1
        params['stack'].append(blocks)
    return params


# ----------------------------------------------------------------------------
if __name__ == "__main__":
    cfg = dict(in_channels=16, out_channels=32, kernel_size=3,
               stack_num=2, stack_size=2)
    N, T = 2, 128

    key = jax.random.PRNGKey(0)
    kx, kp = jax.random.split(key)
    x = jax.random.normal(kx, (N, 1, cfg['in_channels'], T), dtype=jnp.float32)
    params = init_mdtc_params(kp, cfg)

    out = jax.block_until_ready(mdtc_forward_pallas(x, params, cfg))
    assert out.shape == (N, cfg['out_channels'], T)

    ref = jax.block_until_ready(mdtc_forward_ref(x, params, cfg))
    # bf16 MXU operands (f32 accumulation) vs. the all-f32 HIGHEST reference.
    np.testing.assert_allclose(np.asarray(out), np.asarray(ref),
                               rtol=2e-2, atol=2e-2)

    # Exercise both batching paths (batch-folded and batch-parallel grid) so
    # the kernel is validated regardless of which chip picks which path.
    for bp in (False, True):
        o = jax.block_until_ready(
            mdtc_forward_pallas(x, params, cfg, batch_parallel=bp))
        np.testing.assert_allclose(np.asarray(o), np.asarray(ref),
                                   rtol=2e-2, atol=2e-2)

    print("KERNEL_OK")
</pallas_src>

<mosaic_0001>
module attributes {stable_mosaic.version = 11 : i64} {
  func.func @kernel(%arg0: i32, %arg1: memref<1x16x256xf32, #tpu.memory_space<vmem>>, %arg2: memref<6x32x128xbf16, #tpu.memory_space<vmem>>, %arg3: memref<1x32x256xf32, #tpu.memory_space<vmem>>) attributes {dimension_semantics = [#tpu.dimension_semantics<arbitrary>], iteration_bounds = array<i64: 1>, scalar_prefetch = 0 : i64, scratch_operands = 0 : i64, tpu.core_type = #tpu.core_type<tc>, window_params = [{transform_indices = @transform_0, window_bounds = array<i64: 1, 16, 256>}, {pipeline_mode = #tpu.pipeline_mode<synchronous>, transform_indices = @transform_1, window_bounds = array<i64: 6, 32, 128>}, {transform_indices = @transform_2, window_bounds = array<i64: 1, 32, 256>}]} {
    %0 = tpu.iota {dimensions = array<i32: 1>} : vector<32x256xi32>
    %c127_i32 = arith.constant 127 : i32
    %1 = vector.broadcast %c127_i32 : i32 to vector<32x256xi32>
    %2 = arith.andi %0, %1 : vector<32x256xi32>
    %c1_i32 = arith.constant 1 : i32
    %3 = vector.broadcast %c1_i32 : i32 to vector<32x256xi32>
    %4 = arith.cmpi sge, %2, %3 : vector<32x256xi32>
    %c2_i32 = arith.constant 2 : i32
    %5 = vector.broadcast %c2_i32 : i32 to vector<32x256xi32>
    %6 = arith.cmpi sge, %2, %5 : vector<32x256xi32>
    %c4_i32 = arith.constant 4 : i32
    %7 = vector.broadcast %c4_i32 : i32 to vector<32x256xi32>
    %8 = arith.cmpi sge, %2, %7 : vector<32x256xi32>
    %c0 = arith.constant 0 : index
    %c0_0 = arith.constant 0 : index
    %c0_1 = arith.constant 0 : index
    %9 = vector.load %arg2[%c0, %c0_0, %c0_1] : memref<6x32x128xbf16, #tpu.memory_space<vmem>>, vector<1x32x128xbf16>
    %10 = vector.shape_cast %9 : vector<1x32x128xbf16> to vector<32x128xbf16>
    %11 = vector.extract_strided_slice %10 {offsets = [0, 0], sizes = [32, 16], strides = [1, 1]} : vector<32x128xbf16> to vector<32x16xbf16>
    %c0_2 = arith.constant 0 : index
    %c0_3 = arith.constant 0 : index
    %c0_4 = arith.constant 0 : index
    %12 = vector.load %arg1[%c0_2, %c0_3, %c0_4] : memref<1x16x256xf32, #tpu.memory_space<vmem>>, vector<1x16x256xf32>
    %13 = vector.shape_cast %12 : vector<1x16x256xf32> to vector<16x256xf32>
    %14 = arith.truncf %13 : vector<16x256xf32> to vector<16x256xbf16>
    %cst = arith.constant dense<0.000000e+00> : vector<32x256xf32>
    %15 = tpu.matmul %11, %14, %cst {dimension_numbers = #tpu.dot_dimension_numbers<[1], [0], [0], [1], [0, 0, 1, 1], [], []>} : vector<32x16xbf16>, vector<16x256xbf16>, vector<32x256xf32> -> vector<32x256xf32>
    %16 = vector.extract_strided_slice %10 {offsets = [0, 16], sizes = [32, 1], strides = [1, 1]} : vector<32x128xbf16> to vector<32x1xbf16>
    %17 = arith.extf %16 : vector<32x1xbf16> to vector<32x1xf32>
    %18 = vector.broadcast %17 : vector<32x1xf32> to vector<32x256xf32>
    %19 = arith.addf %15, %18 : vector<32x256xf32>
    %c1 = arith.constant 1 : index
    %c0_5 = arith.constant 0 : index
    %c0_6 = arith.constant 0 : index
    %20 = vector.load %arg2[%c1, %c0_5, %c0_6] : memref<6x32x128xbf16, #tpu.memory_space<vmem>>, vector<1x32x128xbf16>
    %21 = vector.shape_cast %20 : vector<1x32x128xbf16> to vector<32x128xbf16>
    %22 = vector.extract_strided_slice %21 {offsets = [0, 0], sizes = [32, 32], strides = [1, 1]} : vector<32x128xbf16> to vector<32x32xbf16>
    %23 = vector.extract_strided_slice %21 {offsets = [0, 32], sizes = [32, 32], strides = [1, 1]} : vector<32x128xbf16> to vector<32x32xbf16>
    %24 = vector.extract_strided_slice %21 {offsets = [0, 64], sizes = [32, 3], strides = [1, 1]} : vector<32x128xbf16> to vector<32x3xbf16>
    %25 = arith.extf %24 : vector<32x3xbf16> to vector<32x3xf32>
    %26 = vector.extract_strided_slice %21 {offsets = [0, 67], sizes = [32, 1], strides = [1, 1]} : vector<32x128xbf16> to vector<32x1xbf16>
    %27 = arith.extf %26 : vector<32x1xbf16> to vector<32x1xf32>
    %28 = vector.extract_strided_slice %21 {offsets = [0, 68], sizes = [32, 1], strides = [1, 1]} : vector<32x128xbf16> to vector<32x1xbf16>
    %29 = arith.extf %28 : vector<32x1xbf16> to vector<32x1xf32>
    %30 = vector.extract_strided_slice %21 {offsets = [0, 69], sizes = [32, 1], strides = [1, 1]} : vector<32x128xbf16> to vector<32x1xbf16>
    %31 = arith.extf %30 : vector<32x1xbf16> to vector<32x1xf32>
    %c2_i32_7 = arith.constant 2 : i32
    %32 = tpu.dynamic_rotate %19 by %c2_i32_7 dim 1 : vector<32x256xf32>, i32 -> vector<32x256xf32>
    %cst_8 = arith.constant 0.000000e+00 : f32
    %33 = vector.broadcast %cst_8 : f32 to vector<32x256xf32>
    %34 = arith.select %6, %32, %33 : vector<32x256xi1>, vector<32x256xf32>
    %35 = vector.extract_strided_slice %25 {offsets = [0, 0], sizes = [32, 1], strides = [1, 1]} : vector<32x3xf32> to vector<32x1xf32>
    %36 = vector.broadcast %35 : vector<32x1xf32> to vector<32x256xf32>
    %37 = arith.mulf %36, %34 : vector<32x256xf32>
    %38 = vector.broadcast %27 : vector<32x1xf32> to vector<32x256xf32>
    %39 = arith.addf %38, %37 : vector<32x256xf32>
    %c1_i32_9 = arith.constant 1 : i32
    %40 = tpu.dynamic_rotate %19 by %c1_i32_9 dim 1 : vector<32x256xf32>, i32 -> vector<32x256xf32>
    %cst_10 = arith.constant 0.000000e+00 : f32
    %41 = vector.broadcast %cst_10 : f32 to vector<32x256xf32>
    %42 = arith.select %4, %40, %41 : vector<32x256xi1>, vector<32x256xf32>
    %43 = vector.extract_strided_slice %25 {offsets = [0, 1], sizes = [32, 1], strides = [1, 1]} : vector<32x3xf32> to vector<32x1xf32>
    %44 = vector.broadcast %43 : vector<32x1xf32> to vector<32x256xf32>
    %45 = arith.mulf %44, %42 : vector<32x256xf32>
    %46 = arith.addf %39, %45 : vector<32x256xf32>
    %47 = vector.extract_strided_slice %25 {offsets = [0, 2], sizes = [32, 1], strides = [1, 1]} : vector<32x3xf32> to vector<32x1xf32>
    %48 = vector.broadcast %47 : vector<32x1xf32> to vector<32x256xf32>
    %49 = arith.mulf %48, %19 : vector<32x256xf32>
    %50 = arith.addf %46, %49 : vector<32x256xf32>
    %51 = arith.truncf %50 : vector<32x256xf32> to vector<32x256xbf16>
    %cst_11 = arith.constant dense<0.000000e+00> : vector<32x256xf32>
    %52 = tpu.matmul %22, %51, %cst_11 {dimension_numbers = #tpu.dot_dimension_numbers<[1], [0], [0], [1], [0, 0, 1, 1], [], []>} : vector<32x32xbf16>, vector<32x256xbf16>, vector<32x256xf32> -> vector<32x256xf32>
    %53 = vector.broadcast %29 : vector<32x1xf32> to vector<32x256xf32>
    %54 = arith.addf %52, %53 : vector<32x256xf32>
    %cst_12 = arith.constant 0.000000e+00 : f32
    %55 = vector.broadcast %cst_12 : f32 to vector<32x256xf32>
    %56 = arith.maximumf %54, %55 : vector<32x256xf32>
    %57 = arith.truncf %56 : vector<32x256xf32> to vector<32x256xbf16>
    %cst_13 = arith.constant dense<0.000000e+00> : vector<32x256xf32>
    %58 = tpu.matmul %23, %57, %cst_13 {dimension_numbers = #tpu.dot_dimension_numbers<[1], [0], [0], [1], [0, 0, 1, 1], [], []>} : vector<32x32xbf16>, vector<32x256xbf16>, vector<32x256xf32> -> vector<32x256xf32>
    %59 = vector.broadcast %31 : vector<32x1xf32> to vector<32x256xf32>
    %60 = arith.addf %58, %59 : vector<32x256xf32>
    %61 = arith.addf %60, %19 : vector<32x256xf32>
    %cst_14 = arith.constant 0.000000e+00 : f32
    %62 = vector.broadcast %cst_14 : f32 to vector<32x256xf32>
    %63 = arith.maximumf %61, %62 : vector<32x256xf32>
    %c2 = arith.constant 2 : index
    %c0_15 = arith.constant 0 : index
    %c0_16 = arith.constant 0 : index
    %64 = vector.load %arg2[%c2, %c0_15, %c0_16] : memref<6x32x128xbf16, #tpu.memory_space<vmem>>, vector<1x32x128xbf16>
    %65 = vector.shape_cast %64 : vector<1x32x128xbf16> to vector<32x128xbf16>
    %66 = vector.extract_strided_slice %65 {offsets = [0, 0], sizes = [32, 32], strides = [1, 1]} : vector<32x128xbf16> to vector<32x32xbf16>
    %67 = vector.extract_strided_slice %65 {offsets = [0, 32], sizes = [32, 32], strides = [1, 1]} : vector<32x128xbf16> to vector<32x32xbf16>
    %68 = vector.extract_strided_slice %65 {offsets = [0, 64], sizes = [32, 3], strides = [1, 1]} : vector<32x128xbf16> to vector<32x3xbf16>
    %69 = arith.extf %68 : vector<32x3xbf16> to vector<32x3xf32>
    %70 = vector.extract_strided_slice %65 {offsets = [0, 67], sizes = [32, 1], strides = [1, 1]} : vector<32x128xbf16> to vector<32x1xbf16>
    %71 = arith.extf %70 : vector<32x1xbf16> to vector<32x1xf32>
    %72 = vector.extract_strided_slice %65 {offsets = [0, 68], sizes = [32, 1], strides = [1, 1]} : vector<32x128xbf16> to vector<32x1xbf16>
    %73 = arith.extf %72 : vector<32x1xbf16> to vector<32x1xf32>
    %74 = vector.extract_strided_slice %65 {offsets = [0, 69], sizes = [32, 1], strides = [1, 1]} : vector<32x128xbf16> to vector<32x1xbf16>
    %75 = arith.extf %74 : vector<32x1xbf16> to vector<32x1xf32>
    %c2_i32_17 = arith.constant 2 : i32
    %76 = tpu.dynamic_rotate %63 by %c2_i32_17 dim 1 : vector<32x256xf32>, i32 -> vector<32x256xf32>
    %cst_18 = arith.constant 0.000000e+00 : f32
    %77 = vector.broadcast %cst_18 : f32 to vector<32x256xf32>
    %78 = arith.select %6, %76, %77 : vector<32x256xi1>, vector<32x256xf32>
    %79 = vector.extract_strided_slice %69 {offsets = [0, 0], sizes = [32, 1], strides = [1, 1]} : vector<32x3xf32> to vector<32x1xf32>
    %80 = vector.broadcast %79 : vector<32x1xf32> to vector<32x256xf32>
    %81 = arith.mulf %80, %78 : vector<32x256xf32>
    %82 = vector.broadcast %71 : vector<32x1xf32> to vector<32x256xf32>
    %83 = arith.addf %82, %81 : vector<32x256xf32>
    %c1_i32_19 = arith.constant 1 : i32
    %84 = tpu.dynamic_rotate %63 by %c1_i32_19 dim 1 : vector<32x256xf32>, i32 -> vector<32x256xf32>
    %cst_20 = arith.constant 0.000000e+00 : f32
    %85 = vector.broadcast %cst_20 : f32 to vector<32x256xf32>
    %86 = arith.select %4, %84, %85 : vector<32x256xi1>, vector<32x256xf32>
    %87 = vector.extract_strided_slice %69 {offsets = [0, 1], sizes = [32, 1], strides = [1, 1]} : vector<32x3xf32> to vector<32x1xf32>
    %88 = vector.broadcast %87 : vector<32x1xf32> to vector<32x256xf32>
    %89 = arith.mulf %88, %86 : vector<32x256xf32>
    %90 = arith.addf %83, %89 : vector<32x256xf32>
    %91 = vector.extract_strided_slice %69 {offsets = [0, 2], sizes = [32, 1], strides = [1, 1]} : vector<32x3xf32> to vector<32x1xf32>
    %92 = vector.broadcast %91 : vector<32x1xf32> to vector<32x256xf32>
    %93 = arith.mulf %92, %63 : vector<32x256xf32>
    %94 = arith.addf %90, %93 : vector<32x256xf32>
    %95 = arith.truncf %94 : vector<32x256xf32> to vector<32x256xbf16>
    %cst_21 = arith.constant dense<0.000000e+00> : vector<32x256xf32>
    %96 = tpu.matmul %66, %95, %cst_21 {dimension_numbers = #tpu.dot_dimension_numbers<[1], [0], [0], [1], [0, 0, 1, 1], [], []>} : vector<32x32xbf16>, vector<32x256xbf16>, vector<32x256xf32> -> vector<32x256xf32>
    %97 = vector.broadcast %73 : vector<32x1xf32> to vector<32x256xf32>
    %98 = arith.addf %96, %97 : vector<32x256xf32>
    %cst_22 = arith.constant 0.000000e+00 : f32
    %99 = vector.broadcast %cst_22 : f32 to vector<32x256xf32>
    %100 = arith.maximumf %98, %99 : vector<32x256xf32>
    %101 = arith.truncf %100 : vector<32x256xf32> to vector<32x256xbf16>
    %cst_23 = arith.constant dense<0.000000e+00> : vector<32x256xf32>
    %102 = tpu.matmul %67, %101, %cst_23 {dimension_numbers = #tpu.dot_dimension_numbers<[1], [0], [0], [1], [0, 0, 1, 1], [], []>} : vector<32x32xbf16>, vector<32x256xbf16>, vector<32x256xf32> -> vector<32x256xf32>
    %103 = vector.broadcast %75 : vector<32x1xf32> to vector<32x256xf32>
    %104 = arith.addf %102, %103 : vector<32x256xf32>
    %105 = arith.addf %104, %63 : vector<32x256xf32>
    %cst_24 = arith.constant 0.000000e+00 : f32
    %106 = vector.broadcast %cst_24 : f32 to vector<32x256xf32>
    %107 = arith.maximumf %105, %106 : vector<32x256xf32>
    %c3 = arith.constant 3 : index
    %c0_25 = arith.constant 0 : index
    %c0_26 = arith.constant 0 : index
    %108 = vector.load %arg2[%c3, %c0_25, %c0_26] : memref<6x32x128xbf16, #tpu.memory_space<vmem>>, vector<1x32x128xbf16>
    %109 = vector.shape_cast %108 : vector<1x32x128xbf16> to vector<32x128xbf16>
    %110 = vector.extract_strided_slice %109 {offsets = [0, 0], sizes = [32, 32], strides = [1, 1]} : vector<32x128xbf16> to vector<32x32xbf16>
    %111 = vector.extract_strided_slice %109 {offsets = [0, 32], sizes = [32, 32], strides = [1, 1]} : vector<32x128xbf16> to vector<32x32xbf16>
    %112 = vector.extract_strided_slice %109 {offsets = [0, 64], sizes = [32, 3], strides = [1, 1]} : vector<32x128xbf16> to vector<32x3xbf16>
    %113 = arith.extf %112 : vector<32x3xbf16> to vector<32x3xf32>
    %114 = vector.extract_strided_slice %109 {offsets = [0, 67], sizes = [32, 1], strides = [1, 1]} : vector<32x128xbf16> to vector<32x1xbf16>
    %115 = arith.extf %114 : vector<32x1xbf16> to vector<32x1xf32>
    %116 = vector.extract_strided_slice %109 {offsets = [0, 68], sizes = [32, 1], strides = [1, 1]} : vector<32x128xbf16> to vector<32x1xbf16>
    %117 = arith.extf %116 : vector<32x1xbf16> to vector<32x1xf32>
    %118 = vector.extract_strided_slice %109 {offsets = [0, 69], sizes = [32, 1], strides = [1, 1]} : vector<32x128xbf16> to vector<32x1xbf16>
    %119 = arith.extf %118 : vector<32x1xbf16> to vector<32x1xf32>
    %c4_i32_27 = arith.constant 4 : i32
    %120 = tpu.dynamic_rotate %107 by %c4_i32_27 dim 1 : vector<32x256xf32>, i32 -> vector<32x256xf32>
    %cst_28 = arith.constant 0.000000e+00 : f32
    %121 = vector.broadcast %cst_28 : f32 to vector<32x256xf32>
    %122 = arith.select %8, %120, %121 : vector<32x256xi1>, vector<32x256xf32>
    %123 = vector.extract_strided_slice %113 {offsets = [0, 0], sizes = [32, 1], strides = [1, 1]} : vector<32x3xf32> to vector<32x1xf32>
    %124 = vector.broadcast %123 : vector<32x1xf32> to vector<32x256xf32>
    %125 = arith.mulf %124, %122 : vector<32x256xf32>
    %126 = vector.broadcast %115 : vector<32x1xf32> to vector<32x256xf32>
    %127 = arith.addf %126, %125 : vector<32x256xf32>
    %c2_i32_29 = arith.constant 2 : i32
    %128 = tpu.dynamic_rotate %107 by %c2_i32_29 dim 1 : vector<32x256xf32>, i32 -> vector<32x256xf32>
    %cst_30 = arith.constant 0.000000e+00 : f32
    %129 = vector.broadcast %cst_30 : f32 to vector<32x256xf32>
    %130 = arith.select %6, %128, %129 : vector<32x256xi1>, vector<32x256xf32>
    %131 = vector.extract_strided_slice %113 {offsets = [0, 1], sizes = [32, 1], strides = [1, 1]} : vector<32x3xf32> to vector<32x1xf32>
    %132 = vector.broadcast %131 : vector<32x1xf32> to vector<32x256xf32>
    %133 = arith.mulf %132, %130 : vector<32x256xf32>
    %134 = arith.addf %127, %133 : vector<32x256xf32>
    %135 = vector.extract_strided_slice %113 {offsets = [0, 2], sizes = [32, 1], strides = [1, 1]} : vector<32x3xf32> to vector<32x1xf32>
    %136 = vector.broadcast %135 : vector<32x1xf32> to vector<32x256xf32>
    %137 = arith.mulf %136, %107 : vector<32x256xf32>
    %138 = arith.addf %134, %137 : vector<32x256xf32>
    %139 = arith.truncf %138 : vector<32x256xf32> to vector<32x256xbf16>
    %cst_31 = arith.constant dense<0.000000e+00> : vector<32x256xf32>
    %140 = tpu.matmul %110, %139, %cst_31 {dimension_numbers = #tpu.dot_dimension_numbers<[1], [0], [0], [1], [0, 0, 1, 1], [], []>} : vector<32x32xbf16>, vector<32x256xbf16>, vector<32x256xf32> -> vector<32x256xf32>
    %141 = vector.broadcast %117 : vector<32x1xf32> to vector<32x256xf32>
    %142 = arith.addf %140, %141 : vector<32x256xf32>
    %cst_32 = arith.constant 0.000000e+00 : f32
    %143 = vector.broadcast %cst_32 : f32 to vector<32x256xf32>
    %144 = arith.maximumf %142, %143 : vector<32x256xf32>
    %145 = arith.truncf %144 : vector<32x256xf32> to vector<32x256xbf16>
    %cst_33 = arith.constant dense<0.000000e+00> : vector<32x256xf32>
    %146 = tpu.matmul %111, %145, %cst_33 {dimension_numbers = #tpu.dot_dimension_numbers<[1], [0], [0], [1], [0, 0, 1, 1], [], []>} : vector<32x32xbf16>, vector<32x256xbf16>, vector<32x256xf32> -> vector<32x256xf32>
    %147 = vector.broadcast %119 : vector<32x1xf32> to vector<32x256xf32>
    %148 = arith.addf %146, %147 : vector<32x256xf32>
    %149 = arith.addf %148, %107 : vector<32x256xf32>
    %cst_34 = arith.constant 0.000000e+00 : f32
    %150 = vector.broadcast %cst_34 : f32 to vector<32x256xf32>
    %151 = arith.maximumf %149, %150 : vector<32x256xf32>
    %c4 = arith.constant 4 : index
    %c0_35 = arith.constant 0 : index
    %c0_36 = arith.constant 0 : index
    %152 = vector.load %arg2[%c4, %c0_35, %c0_36] : memref<6x32x128xbf16, #tpu.memory_space<vmem>>, vector<1x32x128xbf16>
    %153 = vector.shape_cast %152 : vector<1x32x128xbf16> to vector<32x128xbf16>
    %154 = vector.extract_strided_slice %153 {offsets = [0, 0], sizes = [32, 32], strides = [1, 1]} : vector<32x128xbf16> to vector<32x32xbf16>
    %155 = vector.extract_strided_slice %153 {offsets = [0, 32], sizes = [32, 32], strides = [1, 1]} : vector<32x128xbf16> to vector<32x32xbf16>
    %156 = vector.extract_strided_slice %153 {offsets = [0, 64], sizes = [32, 3], strides = [1, 1]} : vector<32x128xbf16> to vector<32x3xbf16>
    %157 = arith.extf %156 : vector<32x3xbf16> to vector<32x3xf32>
    %158 = vector.extract_strided_slice %153 {offsets = [0, 67], sizes = [32, 1], strides = [1, 1]} : vector<32x128xbf16> to vector<32x1xbf16>
    %159 = arith.extf %158 : vector<32x1xbf16> to vector<32x1xf32>
    %160 = vector.extract_strided_slice %153 {offsets = [0, 68], sizes = [32, 1], strides = [1, 1]} : vector<32x128xbf16> to vector<32x1xbf16>
    %161 = arith.extf %160 : vector<32x1xbf16> to vector<32x1xf32>
    %162 = vector.extract_strided_slice %153 {offsets = [0, 69], sizes = [32, 1], strides = [1, 1]} : vector<32x128xbf16> to vector<32x1xbf16>
    %163 = arith.extf %162 : vector<32x1xbf16> to vector<32x1xf32>
    %c2_i32_37 = arith.constant 2 : i32
    %164 = tpu.dynamic_rotate %151 by %c2_i32_37 dim 1 : vector<32x256xf32>, i32 -> vector<32x256xf32>
    %cst_38 = arith.constant 0.000000e+00 : f32
    %165 = vector.broadcast %cst_38 : f32 to vector<32x256xf32>
    %166 = arith.select %6, %164, %165 : vector<32x256xi1>, vector<32x256xf32>
    %167 = vector.extract_strided_slice %157 {offsets = [0, 0], sizes = [32, 1], strides = [1, 1]} : vector<32x3xf32> to vector<32x1xf32>
    %168 = vector.broadcast %167 : vector<32x1xf32> to vector<32x256xf32>
    %169 = arith.mulf %168, %166 : vector<32x256xf32>
    %170 = vector.broadcast %159 : vector<32x1xf32> to vector<32x256xf32>
    %171 = arith.addf %170, %169 : vector<32x256xf32>
    %c1_i32_39 = arith.constant 1 : i32
    %172 = tpu.dynamic_rotate %151 by %c1_i32_39 dim 1 : vector<32x256xf32>, i32 -> vector<32x256xf32>
    %cst_40 = arith.constant 0.000000e+00 : f32
    %173 = vector.broadcast %cst_40 : f32 to vector<32x256xf32>
    %174 = arith.select %4, %172, %173 : vector<32x256xi1>, vector<32x256xf32>
    %175 = vector.extract_strided_slice %157 {offsets = [0, 1], sizes = [32, 1], strides = [1, 1]} : vector<32x3xf32> to vector<32x1xf32>
    %176 = vector.broadcast %175 : vector<32x1xf32> to vector<32x256xf32>
    %177 = arith.mulf %176, %174 : vector<32x256xf32>
    %178 = arith.addf %171, %177 : vector<32x256xf32>
    %179 = vector.extract_strided_slice %157 {offsets = [0, 2], sizes = [32, 1], strides = [1, 1]} : vector<32x3xf32> to vector<32x1xf32>
    %180 = vector.broadcast %179 : vector<32x1xf32> to vector<32x256xf32>
    %181 = arith.mulf %180, %151 : vector<32x256xf32>
    %182 = arith.addf %178, %181 : vector<32x256xf32>
    %183 = arith.truncf %182 : vector<32x256xf32> to vector<32x256xbf16>
    %cst_41 = arith.constant dense<0.000000e+00> : vector<32x256xf32>
    %184 = tpu.matmul %154, %183, %cst_41 {dimension_numbers = #tpu.dot_dimension_numbers<[1], [0], [0], [1], [0, 0, 1, 1], [], []>} : vector<32x32xbf16>, vector<32x256xbf16>, vector<32x256xf32> -> vector<32x256xf32>
    %185 = vector.broadcast %161 : vector<32x1xf32> to vector<32x256xf32>
    %186 = arith.addf %184, %185 : vector<32x256xf32>
    %cst_42 = arith.constant 0.000000e+00 : f32
    %187 = vector.broadcast %cst_42 : f32 to vector<32x256xf32>
    %188 = arith.maximumf %186, %187 : vector<32x256xf32>
    %189 = arith.truncf %188 : vector<32x256xf32> to vector<32x256xbf16>
    %cst_43 = arith.constant dense<0.000000e+00> : vector<32x256xf32>
    %190 = tpu.matmul %155, %189, %cst_43 {dimension_numbers = #tpu.dot_dimension_numbers<[1], [0], [0], [1], [0, 0, 1, 1], [], []>} : vector<32x32xbf16>, vector<32x256xbf16>, vector<32x256xf32> -> vector<32x256xf32>
    %191 = vector.broadcast %163 : vector<32x1xf32> to vector<32x256xf32>
    %192 = arith.addf %190, %191 : vector<32x256xf32>
    %193 = arith.addf %192, %151 : vector<32x256xf32>
    %cst_44 = arith.constant 0.000000e+00 : f32
    %194 = vector.broadcast %cst_44 : f32 to vector<32x256xf32>
    %195 = arith.maximumf %193, %194 : vector<32x256xf32>
    %c5 = arith.constant 5 : index
    %c0_45 = arith.constant 0 : index
    %c0_46 = arith.constant 0 : index
    %196 = vector.load %arg2[%c5, %c0_45, %c0_46] : memref<6x32x128xbf16, #tpu.memory_space<vmem>>, vector<1x32x128xbf16>
    %197 = vector.shape_cast %196 : vector<1x32x128xbf16> to vector<32x128xbf16>
    %198 = vector.extract_strided_slice %197 {offsets = [0, 0], sizes = [32, 32], strides = [1, 1]} : vector<32x128xbf16> to vector<32x32xbf16>
    %199 = vector.extract_strided_slice %197 {offsets = [0, 32], sizes = [32, 32], strides = [1, 1]} : vector<32x128xbf16> to vector<32x32xbf16>
    %200 = vector.extract_strided_slice %197 {offsets = [0, 64], sizes = [32, 3], strides = [1, 1]} : vector<32x128xbf16> to vector<32x3xbf16>
    %201 = arith.extf %200 : vector<32x3xbf16> to vector<32x3xf32>
    %202 = vector.extract_strided_slice %197 {offsets = [0, 67], sizes = [32, 1], strides = [1, 1]} : vector<32x128xbf16> to vector<32x1xbf16>
    %203 = arith.extf %202 : vector<32x1xbf16> to vector<32x1xf32>
    %204 = vector.extract_strided_slice %197 {offsets = [0, 68], sizes = [32, 1], strides = [1, 1]} : vector<32x128xbf16> to vector<32x1xbf16>
    %205 = arith.extf %204 : vector<32x1xbf16> to vector<32x1xf32>
    %206 = vector.extract_strided_slice %197 {offsets = [0, 69], sizes = [32, 1], strides = [1, 1]} : vector<32x128xbf16> to vector<32x1xbf16>
    %207 = arith.extf %206 : vector<32x1xbf16> to vector<32x1xf32>
    %c4_i32_47 = arith.constant 4 : i32
    %208 = tpu.dynamic_rotate %195 by %c4_i32_47 dim 1 : vector<32x256xf32>, i32 -> vector<32x256xf32>
    %cst_48 = arith.constant 0.000000e+00 : f32
    %209 = vector.broadcast %cst_48 : f32 to vector<32x256xf32>
    %210 = arith.select %8, %208, %209 : vector<32x256xi1>, vector<32x256xf32>
    %211 = vector.extract_strided_slice %201 {offsets = [0, 0], sizes = [32, 1], strides = [1, 1]} : vector<32x3xf32> to vector<32x1xf32>
    %212 = vector.broadcast %211 : vector<32x1xf32> to vector<32x256xf32>
    %213 = arith.mulf %212, %210 : vector<32x256xf32>
    %214 = vector.broadcast %203 : vector<32x1xf32> to vector<32x256xf32>
    %215 = arith.addf %214, %213 : vector<32x256xf32>
    %c2_i32_49 = arith.constant 2 : i32
    %216 = tpu.dynamic_rotate %195 by %c2_i32_49 dim 1 : vector<32x256xf32>, i32 -> vector<32x256xf32>
    %cst_50 = arith.constant 0.000000e+00 : f32
    %217 = vector.broadcast %cst_50 : f32 to vector<32x256xf32>
    %218 = arith.select %6, %216, %217 : vector<32x256xi1>, vector<32x256xf32>
    %219 = vector.extract_strided_slice %201 {offsets = [0, 1], sizes = [32, 1], strides = [1, 1]} : vector<32x3xf32> to vector<32x1xf32>
    %220 = vector.broadcast %219 : vector<32x1xf32> to vector<32x256xf32>
    %221 = arith.mulf %220, %218 : vector<32x256xf32>
    %222 = arith.addf %215, %221 : vector<32x256xf32>
    %223 = vector.extract_strided_slice %201 {offsets = [0, 2], sizes = [32, 1], strides = [1, 1]} : vector<32x3xf32> to vector<32x1xf32>
    %224 = vector.broadcast %223 : vector<32x1xf32> to vector<32x256xf32>
    %225 = arith.mulf %224, %195 : vector<32x256xf32>
    %226 = arith.addf %222, %225 : vector<32x256xf32>
    %227 = arith.truncf %226 : vector<32x256xf32> to vector<32x256xbf16>
    %cst_51 = arith.constant dense<0.000000e+00> : vector<32x256xf32>
    %228 = tpu.matmul %198, %227, %cst_51 {dimension_numbers = #tpu.dot_dimension_numbers<[1], [0], [0], [1], [0, 0, 1, 1], [], []>} : vector<32x32xbf16>, vector<32x256xbf16>, vector<32x256xf32> -> vector<32x256xf32>
    %229 = vector.broadcast %205 : vector<32x1xf32> to vector<32x256xf32>
    %230 = arith.addf %228, %229 : vector<32x256xf32>
    %cst_52 = arith.constant 0.000000e+00 : f32
    %231 = vector.broadcast %cst_52 : f32 to vector<32x256xf32>
    %232 = arith.maximumf %230, %231 : vector<32x256xf32>
    %233 = arith.truncf %232 : vector<32x256xf32> to vector<32x256xbf16>
    %cst_53 = arith.constant dense<0.000000e+00> : vector<32x256xf32>
    %234 = tpu.matmul %199, %233, %cst_53 {dimension_numbers = #tpu.dot_dimension_numbers<[1], [0], [0], [1], [0, 0, 1, 1], [], []>} : vector<32x32xbf16>, vector<32x256xbf16>, vector<32x256xf32> -> vector<32x256xf32>
    %235 = vector.broadcast %207 : vector<32x1xf32> to vector<32x256xf32>
    %236 = arith.addf %234, %235 : vector<32x256xf32>
    %237 = arith.addf %236, %195 : vector<32x256xf32>
    %cst_54 = arith.constant 0.000000e+00 : f32
    %238 = vector.broadcast %cst_54 : f32 to vector<32x256xf32>
    %239 = arith.maximumf %237, %238 : vector<32x256xf32>
    %240 = arith.addf %151, %239 : vector<32x256xf32>
    %c0_55 = arith.constant 0 : index
    %c0_56 = arith.constant 0 : index
    %c0_57 = arith.constant 0 : index
    %241 = vector.load %arg3[%c0_55, %c0_56, %c0_57] : memref<1x32x256xf32, #tpu.memory_space<vmem>>, vector<1x32x256xf32>
    %242 = vector.shape_cast %241 : vector<1x32x256xf32> to vector<32x256xf32>
    %243 = vector.shape_cast %240 : vector<32x256xf32> to vector<1x32x256xf32>
    tpu.vector_store %arg3[%c0_55, %c0_56, %c0_57], %243 {strides = array<i32>} : memref<1x32x256xf32, #tpu.memory_space<vmem>>, vector<1x32x256xf32>,
    return
  }
  func.func @transform_0(%arg0: i32) -> (i32, i32, i32) {
    %c0_i32 = arith.constant 0 : i32
    %c0_i32_0 = arith.constant 0 : i32
    %c0_i32_1 = arith.constant 0 : i32
    return %arg0, %c0_i32, %c0_i32_0 : i32, i32, i32
  }
  func.func @transform_1(%arg0: i32) -> (i32, i32, i32) {
    %c0_i32 = arith.constant 0 : i32
    %c0_i32_0 = arith.constant 0 : i32
    %c0_i32_1 = arith.constant 0 : i32
    %c0_i32_2 = arith.constant 0 : i32
    return %c0_i32, %c0_i32_0, %c0_i32_1 : i32, i32, i32
  }
  func.func @transform_2(%arg0: i32) -> (i32, i32, i32) {
    %c0_i32 = arith.constant 0 : i32
    %c0_i32_0 = arith.constant 0 : i32
    %c0_i32_1 = arith.constant 0 : i32
    return %arg0, %c0_i32, %c0_i32_0 : i32, i32, i32
  }
}

</mosaic_0001>

<llo_original>
// kernel: tpu_custom_call.1
$region0: #{tpu_custom_call.1}
  #allocation0 [shape = 'u32[]', space=smem, size = 0x4, offset = 0x4, fixed_abs, tag = 'smem constant byte address 0x4 - core index']
  #allocation1 [shape = 'u32[72,128]{1,0:T(1,128)}', space=vmem, size = 0x9000, scoped, tag = 'internal scratch']
  %s0 = inlined_call_operand.hbm [shape: f32[1,16,256], index: 0, kind: input, shape index: {}]
  %s1 = inlined_call_operand.hbm [shape: bf16[6,32,128], index: 1, kind: input, shape index: {}]
  %s2 = inlined_call_operand.hbm [shape: f32[1,32,256], index: 2, kind: output, shape index: {}]
  %s3 = sld [smem:[#allocation0]]
  $region26: #{tpu_custom_call.1} parent=0
    _
  %s5 = ssub.s32 1, %s3
  %s6 = scalar_select 0, %s5, %s3
  $region1: #{tpu_custom_call.1} parent=0
    #allocation2 [shape = 'u8[16384]{0}', space=vmem, size = 0x4000, scoped, tag = 'input window, operand 0, single buffered']
    #allocation3 [shape = 's32[1]{0}', space=sflag, size = 0x4, scoped, tag = 'scoped memory for tpu_custom_call.1']
    #allocation4 [shape = 's32[1]{0}', space=sflag, size = 0x4, scoped, tag = 'scoped memory for tpu_custom_call.1']
    #allocation5 [shape = 'u8[49152]{0}', space=vmem, size = 0xc000, scoped, tag = 'input window, operand 1, single buffered']
    #allocation6 [shape = 's32[1]{0}', space=sflag, size = 0x4, scoped, tag = 'scoped memory for tpu_custom_call.1']
    #allocation7 [shape = 'u8[32768]{0}', space=vmem, size = 0x8000, scoped, tag = 'output window, operand 0, single buffered']
    %7 = vsyncpa [#allocation3], 0
    %8 = vsyncpa [#allocation6], 0
    %9 = vsyncpa [#allocation4], 0
    // Predicated region
    $region2: #{tpu_custom_call.1} parent=1 // pred_check
      _
    $region3: #{tpu_custom_call.1} parent=1 // pred_check_branch
      %11 = sbr.rel (0) target = $region5
    $region4: #{tpu_custom_call.1} parent=1 // pred_region
      %13 = vsyncadd [#allocation3], 0
      %s14 = sshll.u32 %s0, 4
      %s15 = int_to_ptr.hbm [resolvable:$true] %s14
      %s16 = sshll.u32 [#allocation2], 4
      %s17 = int_to_ptr.vmem [resolvable:$true] %s16
      %22 = dma.hbm_to_vmem [thread:$0]  %s15, 512, %s17, [#allocation3], 256, 256, 16
    $region5: #{tpu_custom_call.1} parent=1 // pred_fallthru
      _
    // Predicated region
    $region6: #{tpu_custom_call.1} parent=1 // pred_check
      _
    $region7: #{tpu_custom_call.1} parent=1 // pred_check_branch
      %24 = sbr.rel (0) target = $region9
    $region8: #{tpu_custom_call.1} parent=1 // pred_region
      %26 = vsyncadd [#allocation6], 0
      %s27 = sshll.u32 %s1, 4
      %s28 = int_to_ptr.hbm [resolvable:$true] %s27
      %s29 = sshll.u32 [#allocation5], 4
      %s30 = int_to_ptr.vmem [resolvable:$true] %s29
      %35 = dma.hbm_to_vmem [thread:$0]  %s28, 1536, %s30, [#allocation6], 64, 64, 4
    $region9: #{tpu_custom_call.1} parent=1 // pred_fallthru
      _
    // Predicated region
    $region10: #{tpu_custom_call.1} parent=1 // pred_check
      _
    $region11: #{tpu_custom_call.1} parent=1 // pred_check_branch
      %37 = sbr.rel (0) target = $region13
    $region12: #{tpu_custom_call.1} parent=1 // pred_region
      %39 = dma.done [#allocation3], 512
    $region13: #{tpu_custom_call.1} parent=1 // pred_fallthru
      _
    // Predicated region
    $region14: #{tpu_custom_call.1} parent=1 // pred_check
      _
    $region15: #{tpu_custom_call.1} parent=1 // pred_check_branch
      %41 = sbr.rel (0) target = $region17
    $region16: #{tpu_custom_call.1} parent=1 // pred_region
      %43 = dma.done [#allocation6], 1536
    $region17: #{tpu_custom_call.1} parent=1 // pred_fallthru
      _
    %v45 = vlaneseq
    %v46 = vand.u32 %v45, 127
    %v47 = vadd.s32 %v46, 128
    %v48 = vand.u32 %v46, 127
    %v49 = vand.u32 %v47, 127
    %vm50 = vcmp.ge.s32.totalorder %v48, 1
    %vm51 = vcmp.ge.s32.totalorder %v49, 1
    %vm52 = vcmp.ge.s32.totalorder %v48, 2
    %vm53 = vcmp.ge.s32.totalorder %v49, 2
    %vm54 = vcmp.ge.s32.totalorder %v48, 4
    %vm55 = vcmp.ge.s32.totalorder %v49, 4
    %v56 = vld [vmem:[#allocation5] sm:$0xf]
    %v57 = vld [vmem:[#allocation5 + $0x4] sm:$0xf]
    %v58 = vld [vmem:[#allocation5 + $0x8] sm:$0xf]
    %v59 = vld [vmem:[#allocation5 + $0xc] sm:$0xf]
    %v60 = vld [vmem:[#allocation2] sm:$0xff]
    %v61 = vld [vmem:[#allocation2 + $0x8] sm:$0xff]
    %v62 = vld [vmem:[#allocation2 + $0x10] sm:$0xff]
    %v63 = vld [vmem:[#allocation2 + $0x18] sm:$0xff]
    %v64 = vpack.c.bf16 %v62, %v60
    %v65 = vpack.c.bf16 %v63, %v61
    %v66 = vunpack.c.l.bf16 %v56
    %v67 = vunpack.c.l.bf16 %v57
    %v68 = vunpack.c.l.bf16 %v58
    %v69 = vunpack.c.l.bf16 %v59
    %71 = vset.pattern.permute.xlu0 16
    %72 = vperm.xlu0 %71, %v66
    %v73 = vpop.permute.xlu0 %72
    %76 = vset.pattern.permute.xlu0 16
    %77 = vperm.xlu0 %76, %v67
    %v78 = vpop.permute.xlu0 %77
    %81 = vset.pattern.permute.xlu0 16
    %82 = vperm.xlu0 %81, %v68
    %v83 = vpop.permute.xlu0 %82
    %86 = vset.pattern.permute.xlu0 16
    %87 = vperm.xlu0 %86, %v69
    %v88 = vpop.permute.xlu0 %87
    %v94 = vunpack.c.l.b16 %v56
    %v95 = vunpack.c.l.b16 %v57
    %v96 = vunpack.c.l.b16 %v58
    %v97 = vunpack.c.l.b16 %v59
    %v98 = vpack.c.b16 %v95, %v94
    %v99 = vpack.c.b16 %v97, %v96
    %vm100 = vcmask 130048
    %v102 = vsel %vm100, %v98, 0
    %v105 = vsel %vm100, %v99, 0
    %107 = vmatpush.bf16.msra.mxu0 0
    %108 = vmatpush.bf16.msra.mxu0 0
    %109 = vmatpush.bf16.msra.mxu0 0
    %110 = vmatpush.bf16.msra.mxu0 0
    %111 = vmatpush.bf16.msra.mxu0 0
    %112 = vmatpush.bf16.msra.mxu0 0
    %113 = vmatpush.bf16.msra.mxu0 0
    %114 = vmatpush.bf16.msra.mxu0 %v64
    %115 = vmatmul.bf16.gmra.mxu0 %v102
    %v116 = vpop.f32.mrf.mxu0
    %v117 = vadd.f32 %v73, %v116
    %v118 = vpop.f32.mrf.mxu0
    %v119 = vadd.f32 %v78, %v118
    %120 = vmatmul.bf16.gmra.mxu0 %v105
    %v121 = vpop.f32.mrf.mxu0
    %v122 = vadd.f32 %v83, %v121
    %v123 = vpop.f32.mrf.mxu0
    %v124 = vadd.f32 %v88, %v123
    %125 = vdwg.mxu0
    %126 = vmatpush.bf16.msra.mxu0 0
    %127 = vmatpush.bf16.msra.mxu0 0
    %128 = vmatpush.bf16.msra.mxu0 0
    %129 = vmatpush.bf16.msra.mxu0 0
    %130 = vmatpush.bf16.msra.mxu0 0
    %131 = vmatpush.bf16.msra.mxu0 0
    %132 = vmatpush.bf16.msra.mxu0 0
    %133 = vmatpush.bf16.msra.mxu0 %v65
    %134 = vmatmul.bf16.gmra.mxu0 %v102
    %v135 = vpop.f32.mrf.mxu0
    %v136 = vadd.f32 %v73, %v135
    %v137 = vpop.f32.mrf.mxu0
    %v138 = vadd.f32 %v78, %v137
    %139 = vmatmul.bf16.gmra.mxu0 %v105
    %v140 = vpop.f32.mrf.mxu0
    %v141 = vadd.f32 %v83, %v140
    %v142 = vpop.f32.mrf.mxu0
    %v143 = vadd.f32 %v88, %v142
    %144 = vdwg.mxu0
    %s145 = scalar_lea.vmem [#allocation5], 16
    %v146 = vld [vmem:[%s145] sm:$0xf]
    %v147 = vld [vmem:[%s145 + $0x4] sm:$0xf]
    %v148 = vld [vmem:[%s145 + $0x8] sm:$0xf]
    %v149 = vld [vmem:[%s145 + $0xc] sm:$0xf]
    %v150 = vunpack.c.l.bf16 %v146
    %v151 = vunpack.c.l.bf16 %v147
    %v152 = vunpack.c.l.bf16 %v148
    %v153 = vunpack.c.l.bf16 %v149
    %154 = vrot.lane.b32.xlu0 %v117, 2
    %v155 = vpop.permute.xlu0 %154
    %156 = vrot.lane.b32.xlu0 %v119, 2
    %v157 = vpop.permute.xlu0 %156
    %158 = vrot.lane.b32.xlu0 %v122, 2
    %v159 = vpop.permute.xlu0 %158
    %160 = vrot.lane.b32.xlu0 %v124, 2
    %v161 = vpop.permute.xlu0 %160
    %162 = vrot.lane.b32.xlu0 %v136, 2
    %v163 = vpop.permute.xlu0 %162
    %164 = vrot.lane.b32.xlu0 %v138, 2
    %v165 = vpop.permute.xlu0 %164
    %166 = vrot.lane.b32.xlu0 %v141, 2
    %v167 = vpop.permute.xlu0 %166
    %168 = vrot.lane.b32.xlu0 %v143, 2
    %v169 = vpop.permute.xlu0 %168
    %vm170 = vcmp.lt.s32.totalorder %v46, 2
    %v171 = vsel %vm170, %v155, %v163
    %v172 = vsel %vm170, %v157, %v165
    %v173 = vsel %vm170, %v159, %v167
    %v174 = vsel %vm170, %v161, %v169
    %v175 = vsel %vm170, %v163, %v155
    %v176 = vsel %vm170, %v165, %v157
    %v177 = vsel %vm170, %v167, %v159
    %v178 = vsel %vm170, %v169, %v161
    %v179 = vsel %vm52, %v175, 0.0
    %v180 = vsel %vm53, %v171, 0.0
    %v181 = vsel %vm52, %v176, 0.0
    %v182 = vsel %vm53, %v172, 0.0
    %v183 = vsel %vm52, %v177, 0.0
    %v184 = vsel %vm53, %v173, 0.0
    %v185 = vsel %vm52, %v178, 0.0
    %v186 = vsel %vm53, %v174, 0.0
    %188 = vset.pattern.permute.xlu0 64
    %189 = vperm.xlu0 %188, %v150
    %v190 = vpop.permute.xlu0 %189
    %193 = vset.pattern.permute.xlu0 64
    %194 = vperm.xlu0 %193, %v151
    %v195 = vpop.permute.xlu0 %194
    %198 = vset.pattern.permute.xlu0 64
    %199 = vperm.xlu0 %198, %v152
    %v200 = vpop.permute.xlu0 %199
    %203 = vset.pattern.permute.xlu0 64
    %204 = vperm.xlu0 %203, %v153
    %v205 = vpop.permute.xlu0 %204
    %v207 = vmul.f32 %v190, %v179
    %v208 = vmul.f32 %v190, %v180
    %v209 = vmul.f32 %v195, %v181
    %v210 = vmul.f32 %v195, %v182
    %v211 = vmul.f32 %v200, %v183
    %v212 = vmul.f32 %v200, %v184
    %v213 = vmul.f32 %v205, %v185
    %v214 = vmul.f32 %v205, %v186
    %215 = vset.pattern.permute.xlu0 67
    %216 = vperm.xlu0 %215, %v150
    %v217 = vpop.permute.xlu0 %216
    %219 = vset.pattern.permute.xlu0 67
    %220 = vperm.xlu0 %219, %v151
    %v221 = vpop.permute.xlu0 %220
    %223 = vset.pattern.permute.xlu0 67
    %224 = vperm.xlu0 %223, %v152
    %v225 = vpop.permute.xlu0 %224
    %227 = vset.pattern.permute.xlu0 67
    %228 = vperm.xlu0 %227, %v153
    %v229 = vpop.permute.xlu0 %228
    %v231 = vadd.f32 %v217, %v207
    %v232 = vadd.f32 %v217, %v208
    %v233 = vadd.f32 %v221, %v209
    %v234 = vadd.f32 %v221, %v210
    %v235 = vadd.f32 %v225, %v211
    %v236 = vadd.f32 %v225, %v212
    %v237 = vadd.f32 %v229, %v213
    %v238 = vadd.f32 %v229, %v214
    %239 = vrot.lane.b32.xlu0 %v117, 1
    %v240 = vpop.permute.xlu0 %239
    %241 = vrot.lane.b32.xlu0 %v119, 1
    %v242 = vpop.permute.xlu0 %241
    %243 = vrot.lane.b32.xlu0 %v122, 1
    %v244 = vpop.permute.xlu0 %243
    %245 = vrot.lane.b32.xlu0 %v124, 1
    %v246 = vpop.permute.xlu0 %245
    %247 = vrot.lane.b32.xlu0 %v136, 1
    %v248 = vpop.permute.xlu0 %247
    %249 = vrot.lane.b32.xlu0 %v138, 1
    %v250 = vpop.permute.xlu0 %249
    %251 = vrot.lane.b32.xlu0 %v141, 1
    %v252 = vpop.permute.xlu0 %251
    %253 = vrot.lane.b32.xlu0 %v143, 1
    %v254 = vpop.permute.xlu0 %253
    %vm255 = vcmp.lt.s32.totalorder %v46, 1
    %v256 = vsel %vm255, %v240, %v248
    %v257 = vsel %vm255, %v242, %v250
    %v258 = vsel %vm255, %v244, %v252
    %v259 = vsel %vm255, %v246, %v254
    %v260 = vsel %vm255, %v248, %v240
    %v261 = vsel %vm255, %v250, %v242
    %v262 = vsel %vm255, %v252, %v244
    %v263 = vsel %vm255, %v254, %v246
    %v264 = vsel %vm50, %v260, 0.0
    %v265 = vsel %vm51, %v256, 0.0
    %v266 = vsel %vm50, %v261, 0.0
    %v267 = vsel %vm51, %v257, 0.0
    %v268 = vsel %vm50, %v262, 0.0
    %v269 = vsel %vm51, %v258, 0.0
    %v270 = vsel %vm50, %v263, 0.0
    %v271 = vsel %vm51, %v259, 0.0
    %272 = vset.pattern.permute.xlu0 65
    %273 = vperm.xlu0 %272, %v150
    %v274 = vpop.permute.xlu0 %273
    %276 = vset.pattern.permute.xlu0 65
    %277 = vperm.xlu0 %276, %v151
    %v278 = vpop.permute.xlu0 %277
    %280 = vset.pattern.permute.xlu0 65
    %281 = vperm.xlu0 %280, %v152
    %v282 = vpop.permute.xlu0 %281
    %284 = vset.pattern.permute.xlu0 65
    %285 = vperm.xlu0 %284, %v153
    %v286 = vpop.permute.xlu0 %285
    %v288 = vmul.f32 %v274, %v264
    %v289 = vmul.f32 %v274, %v265
    %v290 = vmul.f32 %v278, %v266
    %v291 = vmul.f32 %v278, %v267
    %v292 = vmul.f32 %v282, %v268
    %v293 = vmul.f32 %v282, %v269
    %v294 = vmul.f32 %v286, %v270
    %v295 = vmul.f32 %v286, %v271
    %v296 = vadd.f32 %v231, %v288
    %v297 = vadd.f32 %v232, %v289
    %v298 = vadd.f32 %v233, %v290
    %v299 = vadd.f32 %v234, %v291
    %v300 = vadd.f32 %v235, %v292
    %v301 = vadd.f32 %v236, %v293
    %v302 = vadd.f32 %v237, %v294
    %v303 = vadd.f32 %v238, %v295
    %304 = vset.pattern.permute.xlu0 66
    %305 = vperm.xlu0 %304, %v150
    %v306 = vpop.permute.xlu0 %305
    %308 = vset.pattern.permute.xlu0 66
    %309 = vperm.xlu0 %308, %v151
    %v310 = vpop.permute.xlu0 %309
    %312 = vset.pattern.permute.xlu0 66
    %313 = vperm.xlu0 %312, %v152
    %v314 = vpop.permute.xlu0 %313
    %316 = vset.pattern.permute.xlu0 66
    %317 = vperm.xlu0 %316, %v153
    %v318 = vpop.permute.xlu0 %317
    %v320 = vmul.f32 %v306, %v117
    %v321 = vmul.f32 %v306, %v136
    %v322 = vmul.f32 %v310, %v119
    %v323 = vmul.f32 %v310, %v138
    %v324 = vmul.f32 %v314, %v122
    %v325 = vmul.f32 %v314, %v141
    %v326 = vmul.f32 %v318, %v124
    %v327 = vmul.f32 %v318, %v143
    %v328 = vadd.f32 %v296, %v320
    %v329 = vadd.f32 %v297, %v321
    %v330 = vadd.f32 %v298, %v322
    %v331 = vadd.f32 %v299, %v323
    %v332 = vadd.f32 %v300, %v324
    %v333 = vadd.f32 %v301, %v325
    %v334 = vadd.f32 %v302, %v326
    %v335 = vadd.f32 %v303, %v327
    %v336 = vpack.c.bf16 %v330, %v328
    %v337 = vpack.c.bf16 %v331, %v329
    %v338 = vpack.c.bf16 %v334, %v332
    %v339 = vpack.c.bf16 %v335, %v333
    %340 = vset.pattern.permute.xlu0 68
    %341 = vperm.xlu0 %340, %v150
    %v342 = vpop.permute.xlu0 %341
    %344 = vset.pattern.permute.xlu0 68
    %345 = vperm.xlu0 %344, %v151
    %v346 = vpop.permute.xlu0 %345
    %348 = vset.pattern.permute.xlu0 68
    %349 = vperm.xlu0 %348, %v152
    %v350 = vpop.permute.xlu0 %349
    %352 = vset.pattern.permute.xlu0 68
    %353 = vperm.xlu0 %352, %v153
    %v354 = vpop.permute.xlu0 %353
    %v360 = vunpack.c.l.b16 %v146
    %v361 = vunpack.c.l.b16 %v147
    %v362 = vunpack.c.l.b16 %v148
    %v363 = vunpack.c.l.b16 %v149
    %v364 = vpack.c.b16 %v361, %v360
    %v365 = vpack.c.b16 %v363, %v362
    %vm366 = vcmask 261120
    %v368 = vsel %vm366, %v364, 0
    %v371 = vsel %vm366, %v365, 0
    %373 = vmatpush.bf16.msra.mxu0 0
    %374 = vmatpush.bf16.msra.mxu0 0
    %375 = vmatpush.bf16.msra.mxu0 0
    %376 = vmatpush.bf16.msra.mxu0 0
    %377 = vmatpush.bf16.msra.mxu0 0
    %378 = vmatpush.bf16.msra.mxu0 0
    %379 = vmatpush.bf16.msra.mxu0 %v338
    %380 = vmatpush.bf16.msra.mxu0 %v336
    %381 = vmatmul.bf16.gmra.mxu0 %v368
    %v382 = vpop.f32.mrf.mxu0
    %v383 = vadd.f32 %v342, %v382
    %v384 = vpop.f32.mrf.mxu0
    %v385 = vadd.f32 %v346, %v384
    %386 = vmatmul.bf16.gmra.mxu0 %v371
    %v387 = vpop.f32.mrf.mxu0
    %v388 = vadd.f32 %v350, %v387
    %v389 = vpop.f32.mrf.mxu0
    %v390 = vadd.f32 %v354, %v389
    %391 = vdwg.mxu0
    %392 = vmatpush.bf16.msra.mxu0 0
    %393 = vmatpush.bf16.msra.mxu0 0
    %394 = vmatpush.bf16.msra.mxu0 0
    %395 = vmatpush.bf16.msra.mxu0 0
    %396 = vmatpush.bf16.msra.mxu0 0
    %397 = vmatpush.bf16.msra.mxu0 0
    %398 = vmatpush.bf16.msra.mxu0 %v339
    %399 = vmatpush.bf16.msra.mxu0 %v337
    %400 = vmatmul.bf16.gmra.mxu0 %v368
    %v401 = vpop.f32.mrf.mxu0
    %v402 = vadd.f32 %v342, %v401
    %v403 = vpop.f32.mrf.mxu0
    %v404 = vadd.f32 %v346, %v403
    %405 = vmatmul.bf16.gmra.mxu0 %v371
    %v406 = vpop.f32.mrf.mxu0
    %v407 = vadd.f32 %v350, %v406
    %v408 = vpop.f32.mrf.mxu0
    %v409 = vadd.f32 %v354, %v408
    %410 = vdwg.mxu0
    %v411 = vmax.f32 %v383, 0.0
    %v412 = vmax.f32 %v402, 0.0
    %v413 = vmax.f32 %v385, 0.0
    %v414 = vmax.f32 %v404, 0.0
    %v415 = vmax.f32 %v388, 0.0
    %v416 = vmax.f32 %v407, 0.0
    %v417 = vmax.f32 %v390, 0.0
    %v418 = vmax.f32 %v409, 0.0
    %v419 = vpack.c.bf16 %v413, %v411
    %v420 = vpack.c.bf16 %v414, %v412
    %v421 = vpack.c.bf16 %v417, %v415
    %v422 = vpack.c.bf16 %v418, %v416
    %423 = vset.pattern.permute.xlu0 69
    %424 = vperm.xlu0 %423, %v150
    %v425 = vpop.permute.xlu0 %424
    %427 = vset.pattern.permute.xlu0 69
    %428 = vperm.xlu0 %427, %v151
    %v429 = vpop.permute.xlu0 %428
    %431 = vset.pattern.permute.xlu0 69
    %432 = vperm.xlu0 %431, %v152
    %v433 = vpop.permute.xlu0 %432
    %435 = vset.pattern.permute.xlu0 69
    %436 = vperm.xlu0 %435, %v153
    %v437 = vpop.permute.xlu0 %436
    %439 = vrot.lane.b32.xlu0 %v364, 96
    %v440 = vpop.permute.xlu0 %439
    %441 = vrot.lane.b32.xlu0 %v365, 96
    %v442 = vpop.permute.xlu0 %441
    %v444 = vsel %vm366, %v440, 0
    %v447 = vsel %vm366, %v442, 0
    %449 = vmatpush.bf16.msra.mxu0 0
    %450 = vmatpush.bf16.msra.mxu0 0
    %451 = vmatpush.bf16.msra.mxu0 0
    %452 = vmatpush.bf16.msra.mxu0 0
    %453 = vmatpush.bf16.msra.mxu0 0
    %454 = vmatpush.bf16.msra.mxu0 0
    %455 = vmatpush.bf16.msra.mxu0 %v421
    %456 = vmatpush.bf16.msra.mxu0 %v419
    %457 = vmatmul.bf16.gmra.mxu0 %v444
    %v458 = vpop.f32.mrf.mxu0
    %v459 = vadd.f32 %v425, %v458
    %v460 = vpop.f32.mrf.mxu0
    %v461 = vadd.f32 %v429, %v460
    %462 = vmatmul.bf16.gmra.mxu0 %v447
    %v463 = vpop.f32.mrf.mxu0
    %v464 = vadd.f32 %v433, %v463
    %v465 = vpop.f32.mrf.mxu0
    %v466 = vadd.f32 %v437, %v465
    %467 = vdwg.mxu0
    %468 = vmatpush.bf16.msra.mxu0 0
    %469 = vmatpush.bf16.msra.mxu0 0
    %470 = vmatpush.bf16.msra.mxu0 0
    %471 = vmatpush.bf16.msra.mxu0 0
    %472 = vmatpush.bf16.msra.mxu0 0
    %473 = vmatpush.bf16.msra.mxu0 0
    %474 = vmatpush.bf16.msra.mxu0 %v422
    %475 = vmatpush.bf16.msra.mxu0 %v420
    %476 = vmatmul.bf16.gmra.mxu0 %v444
    %v477 = vpop.f32.mrf.mxu0
    %v478 = vadd.f32 %v425, %v477
    %v479 = vpop.f32.mrf.mxu0
    %v480 = vadd.f32 %v429, %v479
    %481 = vmatmul.bf16.gmra.mxu0 %v447
    %v482 = vpop.f32.mrf.mxu0
    %v483 = vadd.f32 %v433, %v482
    %v484 = vpop.f32.mrf.mxu0
    %v485 = vadd.f32 %v437, %v484
    %486 = vdwg.mxu0
    %v487 = vadd.f32 %v459, %v117
    %v488 = vadd.f32 %v478, %v136
    %v489 = vadd.f32 %v461, %v119
    %v490 = vadd.f32 %v480, %v138
    %v491 = vadd.f32 %v464, %v122
    %v492 = vadd.f32 %v483, %v141
    %v493 = vadd.f32 %v466, %v124
    %v494 = vadd.f32 %v485, %v143
    %v495 = vmax.f32 %v487, 0.0
    %v496 = vmax.f32 %v488, 0.0
    %v497 = vmax.f32 %v489, 0.0
    %v498 = vmax.f32 %v490, 0.0
    %v499 = vmax.f32 %v491, 0.0
    %v500 = vmax.f32 %v492, 0.0
    %v501 = vmax.f32 %v493, 0.0
    %v502 = vmax.f32 %v494, 0.0
    %s503 = scalar_lea.vmem [#allocation5], 32
    %v504 = vld [vmem:[%s503] sm:$0xf]
    %v505 = vld [vmem:[%s503 + $0x4] sm:$0xf]
    %v506 = vld [vmem:[%s503 + $0x8] sm:$0xf]
    %v507 = vld [vmem:[%s503 + $0xc] sm:$0xf]
    %v508 = vunpack.c.l.bf16 %v504
    %v509 = vunpack.c.l.bf16 %v505
    %v510 = vunpack.c.l.bf16 %v506
    %v511 = vunpack.c.l.bf16 %v507
    %512 = vrot.lane.b32.xlu0 %v495, 2
    %v513 = vpop.permute.xlu0 %512
    %514 = vrot.lane.b32.xlu0 %v497, 2
    %v515 = vpop.permute.xlu0 %514
    %516 = vrot.lane.b32.xlu0 %v499, 2
    %v517 = vpop.permute.xlu0 %516
    %518 = vrot.lane.b32.xlu0 %v501, 2
    %v519 = vpop.permute.xlu0 %518
    %520 = vrot.lane.b32.xlu0 %v496, 2
    %v521 = vpop.permute.xlu0 %520
    %522 = vrot.lane.b32.xlu0 %v498, 2
    %v523 = vpop.permute.xlu0 %522
    %524 = vrot.lane.b32.xlu0 %v500, 2
    %v525 = vpop.permute.xlu0 %524
    %526 = vrot.lane.b32.xlu0 %v502, 2
    %v527 = vpop.permute.xlu0 %526
    %v528 = vsel %vm170, %v513, %v521
    %v529 = vsel %vm170, %v515, %v523
    %v530 = vsel %vm170, %v517, %v525
    %v531 = vsel %vm170, %v519, %v527
    %v532 = vsel %vm170, %v521, %v513
    %v533 = vsel %vm170, %v523, %v515
    %v534 = vsel %vm170, %v525, %v517
    %v535 = vsel %vm170, %v527, %v519
    %v536 = vsel %vm52, %v532, 0.0
    %v537 = vsel %vm53, %v528, 0.0
    %v538 = vsel %vm52, %v533, 0.0
    %v539 = vsel %vm53, %v529, 0.0
    %v540 = vsel %vm52, %v534, 0.0
    %v541 = vsel %vm53, %v530, 0.0
    %v542 = vsel %vm52, %v535, 0.0
    %v543 = vsel %vm53, %v531, 0.0
    %545 = vset.pattern.permute.xlu0 64
    %546 = vperm.xlu0 %545, %v508
    %v547 = vpop.permute.xlu0 %546
    %550 = vset.pattern.permute.xlu0 64
    %551 = vperm.xlu0 %550, %v509
    %v552 = vpop.permute.xlu0 %551
    %555 = vset.pattern.permute.xlu0 64
    %556 = vperm.xlu0 %555, %v510
    %v557 = vpop.permute.xlu0 %556
    %560 = vset.pattern.permute.xlu0 64
    %561 = vperm.xlu0 %560, %v511
    %v562 = vpop.permute.xlu0 %561
    %v564 = vmul.f32 %v547, %v536
    %v565 = vmul.f32 %v547, %v537
    %v566 = vmul.f32 %v552, %v538
    %v567 = vmul.f32 %v552, %v539
    %v568 = vmul.f32 %v557, %v540
    %v569 = vmul.f32 %v557, %v541
    %v570 = vmul.f32 %v562, %v542
    %v571 = vmul.f32 %v562, %v543
    %572 = vset.pattern.permute.xlu0 67
    %573 = vperm.xlu0 %572, %v508
    %v574 = vpop.permute.xlu0 %573
    %576 = vset.pattern.permute.xlu0 67
    %577 = vperm.xlu0 %576, %v509
    %v578 = vpop.permute.xlu0 %577
    %580 = vset.pattern.permute.xlu0 67
    %581 = vperm.xlu0 %580, %v510
    %v582 = vpop.permute.xlu0 %581
    %584 = vset.pattern.permute.xlu0 67
    %585 = vperm.xlu0 %584, %v511
    %v586 = vpop.permute.xlu0 %585
    %v588 = vadd.f32 %v574, %v564
    %v589 = vadd.f32 %v574, %v565
    %v590 = vadd.f32 %v578, %v566
    %v591 = vadd.f32 %v578, %v567
    %v592 = vadd.f32 %v582, %v568
    %v593 = vadd.f32 %v582, %v569
    %v594 = vadd.f32 %v586, %v570
    %v595 = vadd.f32 %v586, %v571
    %596 = vrot.lane.b32.xlu0 %v495, 1
    %v597 = vpop.permute.xlu0 %596
    %598 = vrot.lane.b32.xlu0 %v497, 1
    %v599 = vpop.permute.xlu0 %598
    %600 = vrot.lane.b32.xlu0 %v499, 1
    %v601 = vpop.permute.xlu0 %600
    %602 = vrot.lane.b32.xlu0 %v501, 1
    %v603 = vpop.permute.xlu0 %602
    %604 = vrot.lane.b32.xlu0 %v496, 1
    %v605 = vpop.permute.xlu0 %604
    %606 = vrot.lane.b32.xlu0 %v498, 1
    %v607 = vpop.permute.xlu0 %606
    %608 = vrot.lane.b32.xlu0 %v500, 1
    %v609 = vpop.permute.xlu0 %608
    %610 = vrot.lane.b32.xlu0 %v502, 1
    %v611 = vpop.permute.xlu0 %610
    %v612 = vsel %vm255, %v597, %v605
    %v613 = vsel %vm255, %v599, %v607
    %v614 = vsel %vm255, %v601, %v609
    %v615 = vsel %vm255, %v603, %v611
    %v616 = vsel %vm255, %v605, %v597
    %v617 = vsel %vm255, %v607, %v599
    %v618 = vsel %vm255, %v609, %v601
    %v619 = vsel %vm255, %v611, %v603
    %v620 = vsel %vm50, %v616, 0.0
    %v621 = vsel %vm51, %v612, 0.0
    %v622 = vsel %vm50, %v617, 0.0
    %v623 = vsel %vm51, %v613, 0.0
    %v624 = vsel %vm50, %v618, 0.0
    %v625 = vsel %vm51, %v614, 0.0
    %v626 = vsel %vm50, %v619, 0.0
    %v627 = vsel %vm51, %v615, 0.0
    %628 = vset.pattern.permute.xlu0 65
    %629 = vperm.xlu0 %628, %v508
    %v630 = vpop.permute.xlu0 %629
    %632 = vset.pattern.permute.xlu0 65
    %633 = vperm.xlu0 %632, %v509
    %v634 = vpop.permute.xlu0 %633
    %636 = vset.pattern.permute.xlu0 65
    %637 = vperm.xlu0 %636, %v510
    %v638 = vpop.permute.xlu0 %637
    %640 = vset.pattern.permute.xlu0 65
    %641 = vperm.xlu0 %640, %v511
    %v642 = vpop.permute.xlu0 %641
    %v644 = vmul.f32 %v630, %v620
    %v645 = vmul.f32 %v630, %v621
    %v646 = vmul.f32 %v634, %v622
    %v647 = vmul.f32 %v634, %v623
    %v648 = vmul.f32 %v638, %v624
    %v649 = vmul.f32 %v638, %v625
    %v650 = vmul.f32 %v642, %v626
    %v651 = vmul.f32 %v642, %v627
    %v652 = vadd.f32 %v588, %v644
    %v653 = vadd.f32 %v589, %v645
    %v654 = vadd.f32 %v590, %v646
    %v655 = vadd.f32 %v591, %v647
    %v656 = vadd.f32 %v592, %v648
    %v657 = vadd.f32 %v593, %v649
    %v658 = vadd.f32 %v594, %v650
    %v659 = vadd.f32 %v595, %v651
    %660 = vset.pattern.permute.xlu0 66
    %661 = vperm.xlu0 %660, %v508
    %v662 = vpop.permute.xlu0 %661
    %664 = vset.pattern.permute.xlu0 66
    %665 = vperm.xlu0 %664, %v509
    %v666 = vpop.permute.xlu0 %665
    %668 = vset.pattern.permute.xlu0 66
    %669 = vperm.xlu0 %668, %v510
    %v670 = vpop.permute.xlu0 %669
    %672 = vset.pattern.permute.xlu0 66
    %673 = vperm.xlu0 %672, %v511
    %v674 = vpop.permute.xlu0 %673
    %v676 = vmul.f32 %v662, %v495
    %v677 = vmul.f32 %v662, %v496
    %v678 = vmul.f32 %v666, %v497
    %v679 = vmul.f32 %v666, %v498
    %v680 = vmul.f32 %v670, %v499
    %v681 = vmul.f32 %v670, %v500
    %v682 = vmul.f32 %v674, %v501
    %v683 = vmul.f32 %v674, %v502
    %v684 = vadd.f32 %v652, %v676
    %v685 = vadd.f32 %v653, %v677
    %v686 = vadd.f32 %v654, %v678
    %v687 = vadd.f32 %v655, %v679
    %v688 = vadd.f32 %v656, %v680
    %v689 = vadd.f32 %v657, %v681
    %v690 = vadd.f32 %v658, %v682
    %v691 = vadd.f32 %v659, %v683
    %v692 = vpack.c.bf16 %v686, %v684
    %v693 = vpack.c.bf16 %v687, %v685
    %v694 = vpack.c.bf16 %v690, %v688
    %v695 = vpack.c.bf16 %v691, %v689
    %696 = vset.pattern.permute.xlu0 68
    %697 = vperm.xlu0 %696, %v508
    %v698 = vpop.permute.xlu0 %697
    %700 = vset.pattern.permute.xlu0 68
    %701 = vperm.xlu0 %700, %v509
    %v702 = vpop.permute.xlu0 %701
    %704 = vset.pattern.permute.xlu0 68
    %705 = vperm.xlu0 %704, %v510
    %v706 = vpop.permute.xlu0 %705
    %708 = vset.pattern.permute.xlu0 68
    %709 = vperm.xlu0 %708, %v511
    %v710 = vpop.permute.xlu0 %709
    %v716 = vunpack.c.l.b16 %v504
    %v717 = vunpack.c.l.b16 %v505
    %v718 = vunpack.c.l.b16 %v506
    %v719 = vunpack.c.l.b16 %v507
    %v720 = vpack.c.b16 %v717, %v716
    %v721 = vpack.c.b16 %v719, %v718
    %v723 = vsel %vm366, %v720, 0
    %v726 = vsel %vm366, %v721, 0
    %728 = vmatpush.bf16.msra.mxu0 0
    %729 = vmatpush.bf16.msra.mxu0 0
    %730 = vmatpush.bf16.msra.mxu0 0
    %731 = vmatpush.bf16.msra.mxu0 0
    %732 = vmatpush.bf16.msra.mxu0 0
    %733 = vmatpush.bf16.msra.mxu0 0
    %734 = vmatpush.bf16.msra.mxu0 %v694
    %735 = vmatpush.bf16.msra.mxu0 %v692
    %736 = vmatmul.bf16.gmra.mxu0 %v723
    %v737 = vpop.f32.mrf.mxu0
    %v738 = vadd.f32 %v698, %v737
    %v739 = vpop.f32.mrf.mxu0
    %v740 = vadd.f32 %v702, %v739
    %741 = vmatmul.bf16.gmra.mxu0 %v726
    %v742 = vpop.f32.mrf.mxu0
    %v743 = vadd.f32 %v706, %v742
    %v744 = vpop.f32.mrf.mxu0
    %v745 = vadd.f32 %v710, %v744
    %746 = vdwg.mxu0
    %747 = vmatpush.bf16.msra.mxu0 0
    %748 = vmatpush.bf16.msra.mxu0 0
    %749 = vmatpush.bf16.msra.mxu0 0
    %750 = vmatpush.bf16.msra.mxu0 0
    %751 = vmatpush.bf16.msra.mxu0 0
    %752 = vmatpush.bf16.msra.mxu0 0
    %753 = vmatpush.bf16.msra.mxu0 %v695
    %754 = vmatpush.bf16.msra.mxu0 %v693
    %755 = vmatmul.bf16.gmra.mxu0 %v723
    %v756 = vpop.f32.mrf.mxu0
    %v757 = vadd.f32 %v698, %v756
    %v758 = vpop.f32.mrf.mxu0
    %v759 = vadd.f32 %v702, %v758
    %760 = vmatmul.bf16.gmra.mxu0 %v726
    %v761 = vpop.f32.mrf.mxu0
    %v762 = vadd.f32 %v706, %v761
    %v763 = vpop.f32.mrf.mxu0
    %v764 = vadd.f32 %v710, %v763
    %765 = vdwg.mxu0
    %v766 = vmax.f32 %v738, 0.0
    %v767 = vmax.f32 %v757, 0.0
    %v768 = vmax.f32 %v740, 0.0
    %v769 = vmax.f32 %v759, 0.0
    %v770 = vmax.f32 %v743, 0.0
    %v771 = vmax.f32 %v762, 0.0
    %v772 = vmax.f32 %v745, 0.0
    %v773 = vmax.f32 %v764, 0.0
    %v774 = vpack.c.bf16 %v768, %v766
    %v775 = vpack.c.bf16 %v769, %v767
    %v776 = vpack.c.bf16 %v772, %v770
    %v777 = vpack.c.bf16 %v773, %v771
    %778 = vset.pattern.permute.xlu0 69
    %779 = vperm.xlu0 %778, %v508
    %v780 = vpop.permute.xlu0 %779
    %782 = vset.pattern.permute.xlu0 69
    %783 = vperm.xlu0 %782, %v509
    %v784 = vpop.permute.xlu0 %783
    %786 = vset.pattern.permute.xlu0 69
    %787 = vperm.xlu0 %786, %v510
    %v788 = vpop.permute.xlu0 %787
    %790 = vset.pattern.permute.xlu0 69
    %791 = vperm.xlu0 %790, %v511
    %v792 = vpop.permute.xlu0 %791
    %794 = vrot.lane.b32.xlu0 %v720, 96
    %v795 = vpop.permute.xlu0 %794
    %796 = vrot.lane.b32.xlu0 %v721, 96
    %v797 = vpop.permute.xlu0 %796
    %v799 = vsel %vm366, %v795, 0
    %v802 = vsel %vm366, %v797, 0
    %804 = vmatpush.bf16.msra.mxu0 0
    %805 = vmatpush.bf16.msra.mxu0 0
    %806 = vmatpush.bf16.msra.mxu0 0
    %807 = vmatpush.bf16.msra.mxu0 0
    %808 = vmatpush.bf16.msra.mxu0 0
    %809 = vmatpush.bf16.msra.mxu0 0
    %810 = vmatpush.bf16.msra.mxu0 %v776
    %811 = vmatpush.bf16.msra.mxu0 %v774
    %812 = vmatmul.bf16.gmra.mxu0 %v799
    %v813 = vpop.f32.mrf.mxu0
    %v814 = vadd.f32 %v780, %v813
    %v815 = vpop.f32.mrf.mxu0
    %v816 = vadd.f32 %v784, %v815
    %817 = vmatmul.bf16.gmra.mxu0 %v802
    %v818 = vpop.f32.mrf.mxu0
    %v819 = vadd.f32 %v788, %v818
    %v820 = vpop.f32.mrf.mxu0
    %v821 = vadd.f32 %v792, %v820
    %822 = vdwg.mxu0
    %823 = vmatpush.bf16.msra.mxu0 0
    %824 = vmatpush.bf16.msra.mxu0 0
    %825 = vmatpush.bf16.msra.mxu0 0
    %826 = vmatpush.bf16.msra.mxu0 0
    %827 = vmatpush.bf16.msra.mxu0 0
    %828 = vmatpush.bf16.msra.mxu0 0
    %829 = vmatpush.bf16.msra.mxu0 %v777
    %830 = vmatpush.bf16.msra.mxu0 %v775
    %831 = vmatmul.bf16.gmra.mxu0 %v799
    %v832 = vpop.f32.mrf.mxu0
    %v833 = vadd.f32 %v780, %v832
    %v834 = vpop.f32.mrf.mxu0
    %v835 = vadd.f32 %v784, %v834
    %836 = vmatmul.bf16.gmra.mxu0 %v802
    %v837 = vpop.f32.mrf.mxu0
    %v838 = vadd.f32 %v788, %v837
    %v839 = vpop.f32.mrf.mxu0
    %v840 = vadd.f32 %v792, %v839
    %841 = vdwg.mxu0
    %v842 = vadd.f32 %v814, %v495
    %v843 = vadd.f32 %v833, %v496
    %v844 = vadd.f32 %v816, %v497
    %v845 = vadd.f32 %v835, %v498
    %v846 = vadd.f32 %v819, %v499
    %v847 = vadd.f32 %v838, %v500
    %v848 = vadd.f32 %v821, %v501
    %v849 = vadd.f32 %v840, %v502
    %v850 = vmax.f32 %v842, 0.0
    %v851 = vmax.f32 %v843, 0.0
    %v852 = vmax.f32 %v844, 0.0
    %v853 = vmax.f32 %v845, 0.0
    %v854 = vmax.f32 %v846, 0.0
    %v855 = vmax.f32 %v847, 0.0
    %v856 = vmax.f32 %v848, 0.0
    %v857 = vmax.f32 %v849, 0.0
    %s858 = scalar_lea.vmem [#allocation5], 48
    %v859 = vld [vmem:[%s858] sm:$0xf]
    %v860 = vld [vmem:[%s858 + $0x4] sm:$0xf]
    %v861 = vld [vmem:[%s858 + $0x8] sm:$0xf]
    %v862 = vld [vmem:[%s858 + $0xc] sm:$0xf]
    %v863 = vunpack.c.l.bf16 %v859
    %v864 = vunpack.c.l.bf16 %v860
    %v865 = vunpack.c.l.bf16 %v861
    %v866 = vunpack.c.l.bf16 %v862
    %867 = vrot.lane.b32.xlu0 %v850, 4
    %v868 = vpop.permute.xlu0 %867
    %869 = vrot.lane.b32.xlu0 %v852, 4
    %v870 = vpop.permute.xlu0 %869
    %871 = vrot.lane.b32.xlu0 %v854, 4
    %v872 = vpop.permute.xlu0 %871
    %873 = vrot.lane.b32.xlu0 %v856, 4
    %v874 = vpop.permute.xlu0 %873
    %875 = vrot.lane.b32.xlu0 %v851, 4
    %v876 = vpop.permute.xlu0 %875
    %877 = vrot.lane.b32.xlu0 %v853, 4
    %v878 = vpop.permute.xlu0 %877
    %879 = vrot.lane.b32.xlu0 %v855, 4
    %v880 = vpop.permute.xlu0 %879
    %881 = vrot.lane.b32.xlu0 %v857, 4
    %v882 = vpop.permute.xlu0 %881
    %vm883 = vcmp.lt.s32.totalorder %v46, 4
    %v884 = vsel %vm883, %v868, %v876
    %v885 = vsel %vm883, %v870, %v878
    %v886 = vsel %vm883, %v872, %v880
    %v887 = vsel %vm883, %v874, %v882
    %v888 = vsel %vm883, %v876, %v868
    %v889 = vsel %vm883, %v878, %v870
    %v890 = vsel %vm883, %v880, %v872
    %v891 = vsel %vm883, %v882, %v874
    %v892 = vsel %vm54, %v888, 0.0
    %v893 = vsel %vm55, %v884, 0.0
    %v894 = vsel %vm54, %v889, 0.0
    %v895 = vsel %vm55, %v885, 0.0
    %v896 = vsel %vm54, %v890, 0.0
    %v897 = vsel %vm55, %v886, 0.0
    %v898 = vsel %vm54, %v891, 0.0
    %v899 = vsel %vm55, %v887, 0.0
    %901 = vset.pattern.permute.xlu0 64
    %902 = vperm.xlu0 %901, %v863
    %v903 = vpop.permute.xlu0 %902
    %906 = vset.pattern.permute.xlu0 64
    %907 = vperm.xlu0 %906, %v864
    %v908 = vpop.permute.xlu0 %907
    %911 = vset.pattern.permute.xlu0 64
    %912 = vperm.xlu0 %911, %v865
    %v913 = vpop.permute.xlu0 %912
    %916 = vset.pattern.permute.xlu0 64
    %917 = vperm.xlu0 %916, %v866
    %v918 = vpop.permute.xlu0 %917
    %v920 = vmul.f32 %v903, %v892
    %v921 = vmul.f32 %v903, %v893
    %v922 = vmul.f32 %v908, %v894
    %v923 = vmul.f32 %v908, %v895
    %v924 = vmul.f32 %v913, %v896
    %v925 = vmul.f32 %v913, %v897
    %v926 = vmul.f32 %v918, %v898
    %v927 = vmul.f32 %v918, %v899
    %928 = vset.pattern.permute.xlu0 67
    %929 = vperm.xlu0 %928, %v863
    %v930 = vpop.permute.xlu0 %929
    %932 = vset.pattern.permute.xlu0 67
    %933 = vperm.xlu0 %932, %v864
    %v934 = vpop.permute.xlu0 %933
    %936 = vset.pattern.permute.xlu0 67
    %937 = vperm.xlu0 %936, %v865
    %v938 = vpop.permute.xlu0 %937
    %940 = vset.pattern.permute.xlu0 67
    %941 = vperm.xlu0 %940, %v866
    %v942 = vpop.permute.xlu0 %941
    %v944 = vadd.f32 %v930, %v920
    %v945 = vadd.f32 %v930, %v921
    %v946 = vadd.f32 %v934, %v922
    %v947 = vadd.f32 %v934, %v923
    %v948 = vadd.f32 %v938, %v924
    %v949 = vadd.f32 %v938, %v925
    %v950 = vadd.f32 %v942, %v926
    %v951 = vadd.f32 %v942, %v927
    %952 = vrot.lane.b32.xlu0 %v850, 2
    %v953 = vpop.permute.xlu0 %952
    %954 = vrot.lane.b32.xlu0 %v852, 2
    %v955 = vpop.permute.xlu0 %954
    %956 = vrot.lane.b32.xlu0 %v854, 2
    %v957 = vpop.permute.xlu0 %956
    %958 = vrot.lane.b32.xlu0 %v856, 2
    %v959 = vpop.permute.xlu0 %958
    %960 = vrot.lane.b32.xlu0 %v851, 2
    %v961 = vpop.permute.xlu0 %960
    %962 = vrot.lane.b32.xlu0 %v853, 2
    %v963 = vpop.permute.xlu0 %962
    %964 = vrot.lane.b32.xlu0 %v855, 2
    %v965 = vpop.permute.xlu0 %964
    %966 = vrot.lane.b32.xlu0 %v857, 2
    %v967 = vpop.permute.xlu0 %966
    %v968 = vsel %vm170, %v953, %v961
    %v969 = vsel %vm170, %v955, %v963
    %v970 = vsel %vm170, %v957, %v965
    %v971 = vsel %vm170, %v959, %v967
    %v972 = vsel %vm170, %v961, %v953
    %v973 = vsel %vm170, %v963, %v955
    %v974 = vsel %vm170, %v965, %v957
    %v975 = vsel %vm170, %v967, %v959
    %v976 = vsel %vm52, %v972, 0.0
    %v977 = vsel %vm53, %v968, 0.0
    %v978 = vsel %vm52, %v973, 0.0
    %v979 = vsel %vm53, %v969, 0.0
    %v980 = vsel %vm52, %v974, 0.0
    %v981 = vsel %vm53, %v970, 0.0
    %v982 = vsel %vm52, %v975, 0.0
    %v983 = vsel %vm53, %v971, 0.0
    %984 = vset.pattern.permute.xlu0 65
    %985 = vperm.xlu0 %984, %v863
    %v986 = vpop.permute.xlu0 %985
    %988 = vset.pattern.permute.xlu0 65
    %989 = vperm.xlu0 %988, %v864
    %v990 = vpop.permute.xlu0 %989
    %992 = vset.pattern.permute.xlu0 65
    %993 = vperm.xlu0 %992, %v865
    %v994 = vpop.permute.xlu0 %993
    %996 = vset.pattern.permute.xlu0 65
    %997 = vperm.xlu0 %996, %v866
    %v998 = vpop.permute.xlu0 %997
    %v1000 = vmul.f32 %v986, %v976
    %v1001 = vmul.f32 %v986, %v977
    %v1002 = vmul.f32 %v990, %v978
    %v1003 = vmul.f32 %v990, %v979
    %v1004 = vmul.f32 %v994, %v980
    %v1005 = vmul.f32 %v994, %v981
    %v1006 = vmul.f32 %v998, %v982
    %v1007 = vmul.f32 %v998, %v983
    %v1008 = vadd.f32 %v944, %v1000
    %v1009 = vadd.f32 %v945, %v1001
    %v1010 = vadd.f32 %v946, %v1002
    %v1011 = vadd.f32 %v947, %v1003
    %v1012 = vadd.f32 %v948, %v1004
    %v1013 = vadd.f32 %v949, %v1005
    %v1014 = vadd.f32 %v950, %v1006
    %v1015 = vadd.f32 %v951, %v1007
    %1016 = vset.pattern.permute.xlu0 66
    %1017 = vperm.xlu0 %1016, %v863
    %v1018 = vpop.permute.xlu0 %1017
    %1020 = vset.pattern.permute.xlu0 66
    %1021 = vperm.xlu0 %1020, %v864
    %v1022 = vpop.permute.xlu0 %1021
    %1024 = vset.pattern.permute.xlu0 66
    %1025 = vperm.xlu0 %1024, %v865
    %v1026 = vpop.permute.xlu0 %1025
    %1028 = vset.pattern.permute.xlu0 66
    %1029 = vperm.xlu0 %1028, %v866
    %v1030 = vpop.permute.xlu0 %1029
    %v1032 = vmul.f32 %v1018, %v850
    %v1033 = vmul.f32 %v1018, %v851
    %v1034 = vmul.f32 %v1022, %v852
    %v1035 = vmul.f32 %v1022, %v853
    %v1036 = vmul.f32 %v1026, %v854
    %v1037 = vmul.f32 %v1026, %v855
    %v1038 = vmul.f32 %v1030, %v856
    %v1039 = vmul.f32 %v1030, %v857
    %v1040 = vadd.f32 %v1008, %v1032
    %v1041 = vadd.f32 %v1009, %v1033
    %v1042 = vadd.f32 %v1010, %v1034
    %v1043 = vadd.f32 %v1011, %v1035
    %v1044 = vadd.f32 %v1012, %v1036
    %v1045 = vadd.f32 %v1013, %v1037
    %v1046 = vadd.f32 %v1014, %v1038
    %v1047 = vadd.f32 %v1015, %v1039
    %v1048 = vpack.c.bf16 %v1042, %v1040
    %v1049 = vpack.c.bf16 %v1043, %v1041
    %v1050 = vpack.c.bf16 %v1046, %v1044
    %v1051 = vpack.c.bf16 %v1047, %v1045
    %1052 = vset.pattern.permute.xlu0 68
    %1053 = vperm.xlu0 %1052, %v863
    %v1054 = vpop.permute.xlu0 %1053
    %1056 = vset.pattern.permute.xlu0 68
    %1057 = vperm.xlu0 %1056, %v864
    %v1058 = vpop.permute.xlu0 %1057
    %1060 = vset.pattern.permute.xlu0 68
    %1061 = vperm.xlu0 %1060, %v865
    %v1062 = vpop.permute.xlu0 %1061
    %1064 = vset.pattern.permute.xlu0 68
    %1065 = vperm.xlu0 %1064, %v866
    %v1066 = vpop.permute.xlu0 %1065
    %v1072 = vunpack.c.l.b16 %v859
    %v1073 = vunpack.c.l.b16 %v860
    %v1074 = vunpack.c.l.b16 %v861
    %v1075 = vunpack.c.l.b16 %v862
    %v1076 = vpack.c.b16 %v1073, %v1072
    %v1077 = vpack.c.b16 %v1075, %v1074
    %v1079 = vsel %vm366, %v1076, 0
    %v1082 = vsel %vm366, %v1077, 0
    %1084 = vmatpush.bf16.msra.mxu0 0
    %1085 = vmatpush.bf16.msra.mxu0 0
    %1086 = vmatpush.bf16.msra.mxu0 0
    %1087 = vmatpush.bf16.msra.mxu0 0
    %1088 = vmatpush.bf16.msra.mxu0 0
    %1089 = vmatpush.bf16.msra.mxu0 0
    %1090 = vmatpush.bf16.msra.mxu0 %v1050
    %1091 = vmatpush.bf16.msra.mxu0 %v1048
    %1092 = vmatmul.bf16.gmra.mxu0 %v1079
    %v1093 = vpop.f32.mrf.mxu0
    %v1094 = vadd.f32 %v1054, %v1093
    %v1095 = vpop.f32.mrf.mxu0
    %v1096 = vadd.f32 %v1058, %v1095
    %1097 = vmatmul.bf16.gmra.mxu0 %v1082
    %v1098 = vpop.f32.mrf.mxu0
    %v1099 = vadd.f32 %v1062, %v1098
    %v1100 = vpop.f32.mrf.mxu0
    %v1101 = vadd.f32 %v1066, %v1100
    %1102 = vdwg.mxu0
    %1103 = vmatpush.bf16.msra.mxu0 0
    %1104 = vmatpush.bf16.msra.mxu0 0
    %1105 = vmatpush.bf16.msra.mxu0 0
    %1106 = vmatpush.bf16.msra.mxu0 0
    %1107 = vmatpush.bf16.msra.mxu0 0
    %1108 = vmatpush.bf16.msra.mxu0 0
    %1109 = vmatpush.bf16.msra.mxu0 %v1051
    %1110 = vmatpush.bf16.msra.mxu0 %v1049
    %1111 = vmatmul.bf16.gmra.mxu0 %v1079
    %v1112 = vpop.f32.mrf.mxu0
    %v1113 = vadd.f32 %v1054, %v1112
    %v1114 = vpop.f32.mrf.mxu0
    %v1115 = vadd.f32 %v1058, %v1114
    %1116 = vmatmul.bf16.gmra.mxu0 %v1082
    %v1117 = vpop.f32.mrf.mxu0
    %v1118 = vadd.f32 %v1062, %v1117
    %v1119 = vpop.f32.mrf.mxu0
    %v1120 = vadd.f32 %v1066, %v1119
    %1121 = vdwg.mxu0
    %v1122 = vmax.f32 %v1094, 0.0
    %v1123 = vmax.f32 %v1113, 0.0
    %v1124 = vmax.f32 %v1096, 0.0
    %v1125 = vmax.f32 %v1115, 0.0
    %v1126 = vmax.f32 %v1099, 0.0
    %v1127 = vmax.f32 %v1118, 0.0
    %v1128 = vmax.f32 %v1101, 0.0
    %v1129 = vmax.f32 %v1120, 0.0
    %v1130 = vpack.c.bf16 %v1124, %v1122
    %v1131 = vpack.c.bf16 %v1125, %v1123
    %v1132 = vpack.c.bf16 %v1128, %v1126
    %v1133 = vpack.c.bf16 %v1129, %v1127
    %1134 = vset.pattern.permute.xlu0 69
    %1135 = vperm.xlu0 %1134, %v863
    %v1136 = vpop.permute.xlu0 %1135
    %1138 = vset.pattern.permute.xlu0 69
    %1139 = vperm.xlu0 %1138, %v864
    %v1140 = vpop.permute.xlu0 %1139
    %1142 = vset.pattern.permute.xlu0 69
    %1143 = vperm.xlu0 %1142, %v865
    %v1144 = vpop.permute.xlu0 %1143
    %1146 = vset.pattern.permute.xlu0 69
    %1147 = vperm.xlu0 %1146, %v866
    %v1148 = vpop.permute.xlu0 %1147
    %1150 = vrot.lane.b32.xlu0 %v1076, 96
    %v1151 = vpop.permute.xlu0 %1150
    %1152 = vrot.lane.b32.xlu0 %v1077, 96
    %v1153 = vpop.permute.xlu0 %1152
    %v1155 = vsel %vm366, %v1151, 0
    %v1158 = vsel %vm366, %v1153, 0
    %1160 = vmatpush.bf16.msra.mxu0 0
    %1161 = vmatpush.bf16.msra.mxu0 0
    %1162 = vmatpush.bf16.msra.mxu0 0
    %1163 = vmatpush.bf16.msra.mxu0 0
    %1164 = vmatpush.bf16.msra.mxu0 0
    %1165 = vmatpush.bf16.msra.mxu0 0
    %1166 = vmatpush.bf16.msra.mxu0 %v1132
    %1167 = vmatpush.bf16.msra.mxu0 %v1130
    %1168 = vmatmul.bf16.gmra.mxu0 %v1155
    %v1169 = vpop.f32.mrf.mxu0
    %v1170 = vadd.f32 %v1136, %v1169
    %v1171 = vpop.f32.mrf.mxu0
    %v1172 = vadd.f32 %v1140, %v1171
    %1173 = vmatmul.bf16.gmra.mxu0 %v1158
    %v1174 = vpop.f32.mrf.mxu0
    %v1175 = vadd.f32 %v1144, %v1174
    %v1176 = vpop.f32.mrf.mxu0
    %v1177 = vadd.f32 %v1148, %v1176
    %1178 = vdwg.mxu0
    %1179 = vmatpush.bf16.msra.mxu0 0
    %1180 = vmatpush.bf16.msra.mxu0 0
    %1181 = vmatpush.bf16.msra.mxu0 0
    %1182 = vmatpush.bf16.msra.mxu0 0
    %1183 = vmatpush.bf16.msra.mxu0 0
    %1184 = vmatpush.bf16.msra.mxu0 0
    %1185 = vmatpush.bf16.msra.mxu0 %v1133
    %1186 = vmatpush.bf16.msra.mxu0 %v1131
    %1187 = vmatmul.bf16.gmra.mxu0 %v1155
    %v1188 = vpop.f32.mrf.mxu0
    %v1189 = vadd.f32 %v1136, %v1188
    %v1190 = vpop.f32.mrf.mxu0
    %v1191 = vadd.f32 %v1140, %v1190
    %1192 = vmatmul.bf16.gmra.mxu0 %v1158
    %v1193 = vpop.f32.mrf.mxu0
    %v1194 = vadd.f32 %v1144, %v1193
    %v1195 = vpop.f32.mrf.mxu0
    %v1196 = vadd.f32 %v1148, %v1195
    %1197 = vdwg.mxu0
    %v1198 = vadd.f32 %v1170, %v850
    %v1199 = vadd.f32 %v1189, %v851
    %v1200 = vadd.f32 %v1172, %v852
    %v1201 = vadd.f32 %v1191, %v853
    %v1202 = vadd.f32 %v1175, %v854
    %v1203 = vadd.f32 %v1194, %v855
    %v1204 = vadd.f32 %v1177, %v856
    %v1205 = vadd.f32 %v1196, %v857
    %v1206 = vmax.f32 %v1198, 0.0
    %v1207 = vmax.f32 %v1199, 0.0
    %v1208 = vmax.f32 %v1200, 0.0
    %v1209 = vmax.f32 %v1201, 0.0
    %v1210 = vmax.f32 %v1202, 0.0
    %v1211 = vmax.f32 %v1203, 0.0
    %v1212 = vmax.f32 %v1204, 0.0
    %v1213 = vmax.f32 %v1205, 0.0
    %s1214 = scalar_lea.vmem [#allocation5], 64
    %v1215 = vld [vmem:[%s1214] sm:$0xf]
    %v1216 = vld [vmem:[%s1214 + $0x4] sm:$0xf]
    %v1217 = vld [vmem:[%s1214 + $0x8] sm:$0xf]
    %v1218 = vld [vmem:[%s1214 + $0xc] sm:$0xf]
    %v1219 = vunpack.c.l.bf16 %v1215
    %v1220 = vunpack.c.l.bf16 %v1216
    %v1221 = vunpack.c.l.bf16 %v1217
    %v1222 = vunpack.c.l.bf16 %v1218
    %1223 = vrot.lane.b32.xlu0 %v1206, 2
    %v1224 = vpop.permute.xlu0 %1223
    %1225 = vrot.lane.b32.xlu0 %v1208, 2
    %v1226 = vpop.permute.xlu0 %1225
    %1227 = vrot.lane.b32.xlu0 %v1210, 2
    %v1228 = vpop.permute.xlu0 %1227
    %1229 = vrot.lane.b32.xlu0 %v1212, 2
    %v1230 = vpop.permute.xlu0 %1229
    %1231 = vrot.lane.b32.xlu0 %v1207, 2
    %v1232 = vpop.permute.xlu0 %1231
    %1233 = vrot.lane.b32.xlu0 %v1209, 2
    %v1234 = vpop.permute.xlu0 %1233
    %1235 = vrot.lane.b32.xlu0 %v1211, 2
    %v1236 = vpop.permute.xlu0 %1235
    %1237 = vrot.lane.b32.xlu0 %v1213, 2
    %v1238 = vpop.permute.xlu0 %1237
    %v1239 = vsel %vm170, %v1224, %v1232
    %v1240 = vsel %vm170, %v1226, %v1234
    %v1241 = vsel %vm170, %v1228, %v1236
    %v1242 = vsel %vm170, %v1230, %v1238
    %v1243 = vsel %vm170, %v1232, %v1224
    %v1244 = vsel %vm170, %v1234, %v1226
    %v1245 = vsel %vm170, %v1236, %v1228
    %v1246 = vsel %vm170, %v1238, %v1230
    %v1247 = vsel %vm52, %v1243, 0.0
    %v1248 = vsel %vm53, %v1239, 0.0
    %v1249 = vsel %vm52, %v1244, 0.0
    %v1250 = vsel %vm53, %v1240, 0.0
    %v1251 = vsel %vm52, %v1245, 0.0
    %v1252 = vsel %vm53, %v1241, 0.0
    %v1253 = vsel %vm52, %v1246, 0.0
    %v1254 = vsel %vm53, %v1242, 0.0
    %1256 = vset.pattern.permute.xlu0 64
    %1257 = vperm.xlu0 %1256, %v1219
    %v1258 = vpop.permute.xlu0 %1257
    %1261 = vset.pattern.permute.xlu0 64
    %1262 = vperm.xlu0 %1261, %v1220
    %v1263 = vpop.permute.xlu0 %1262
    %1266 = vset.pattern.permute.xlu0 64
    %1267 = vperm.xlu0 %1266, %v1221
    %v1268 = vpop.permute.xlu0 %1267
    %1271 = vset.pattern.permute.xlu0 64
    %1272 = vperm.xlu0 %1271, %v1222
    %v1273 = vpop.permute.xlu0 %1272
    %v1275 = vmul.f32 %v1258, %v1247
    %v1276 = vmul.f32 %v1258, %v1248
    %v1277 = vmul.f32 %v1263, %v1249
    %v1278 = vmul.f32 %v1263, %v1250
    %v1279 = vmul.f32 %v1268, %v1251
    %v1280 = vmul.f32 %v1268, %v1252
    %v1281 = vmul.f32 %v1273, %v1253
    %v1282 = vmul.f32 %v1273, %v1254
    %1283 = vset.pattern.permute.xlu0 67
    %1284 = vperm.xlu0 %1283, %v1219
    %v1285 = vpop.permute.xlu0 %1284
    %1287 = vset.pattern.permute.xlu0 67
    %1288 = vperm.xlu0 %1287, %v1220
    %v1289 = vpop.permute.xlu0 %1288
    %1291 = vset.pattern.permute.xlu0 67
    %1292 = vperm.xlu0 %1291, %v1221
    %v1293 = vpop.permute.xlu0 %1292
    %1295 = vset.pattern.permute.xlu0 67
    %1296 = vperm.xlu0 %1295, %v1222
    %v1297 = vpop.permute.xlu0 %1296
    %v1299 = vadd.f32 %v1285, %v1275
    %v1300 = vadd.f32 %v1285, %v1276
    %v1301 = vadd.f32 %v1289, %v1277
    %v1302 = vadd.f32 %v1289, %v1278
    %v1303 = vadd.f32 %v1293, %v1279
    %v1304 = vadd.f32 %v1293, %v1280
    %v1305 = vadd.f32 %v1297, %v1281
    %v1306 = vadd.f32 %v1297, %v1282
    %1307 = vrot.lane.b32.xlu0 %v1206, 1
    %v1308 = vpop.permute.xlu0 %1307
    %1309 = vrot.lane.b32.xlu0 %v1208, 1
    %v1310 = vpop.permute.xlu0 %1309
    %1311 = vrot.lane.b32.xlu0 %v1210, 1
    %v1312 = vpop.permute.xlu0 %1311
    %1313 = vrot.lane.b32.xlu0 %v1212, 1
    %v1314 = vpop.permute.xlu0 %1313
    %1315 = vrot.lane.b32.xlu0 %v1207, 1
    %v1316 = vpop.permute.xlu0 %1315
    %1317 = vrot.lane.b32.xlu0 %v1209, 1
    %v1318 = vpop.permute.xlu0 %1317
    %1319 = vrot.lane.b32.xlu0 %v1211, 1
    %v1320 = vpop.permute.xlu0 %1319
    %1321 = vrot.lane.b32.xlu0 %v1213, 1
    %v1322 = vpop.permute.xlu0 %1321
    %v1323 = vsel %vm255, %v1308, %v1316
    %v1324 = vsel %vm255, %v1310, %v1318
    %v1325 = vsel %vm255, %v1312, %v1320
    %v1326 = vsel %vm255, %v1314, %v1322
    %v1327 = vsel %vm255, %v1316, %v1308
    %v1328 = vsel %vm255, %v1318, %v1310
    %v1329 = vsel %vm255, %v1320, %v1312
    %v1330 = vsel %vm255, %v1322, %v1314
    %v1331 = vsel %vm50, %v1327, 0.0
    %v1332 = vsel %vm51, %v1323, 0.0
    %v1333 = vsel %vm50, %v1328, 0.0
    %v1334 = vsel %vm51, %v1324, 0.0
    %v1335 = vsel %vm50, %v1329, 0.0
    %v1336 = vsel %vm51, %v1325, 0.0
    %v1337 = vsel %vm50, %v1330, 0.0
    %v1338 = vsel %vm51, %v1326, 0.0
    %1339 = vset.pattern.permute.xlu0 65
    %1340 = vperm.xlu0 %1339, %v1219
    %v1341 = vpop.permute.xlu0 %1340
    %1343 = vset.pattern.permute.xlu0 65
    %1344 = vperm.xlu0 %1343, %v1220
    %v1345 = vpop.permute.xlu0 %1344
    %1347 = vset.pattern.permute.xlu0 65
    %1348 = vperm.xlu0 %1347, %v1221
    %v1349 = vpop.permute.xlu0 %1348
    %1351 = vset.pattern.permute.xlu0 65
    %1352 = vperm.xlu0 %1351, %v1222
    %v1353 = vpop.permute.xlu0 %1352
    %v1355 = vmul.f32 %v1341, %v1331
    %v1356 = vmul.f32 %v1341, %v1332
    %v1357 = vmul.f32 %v1345, %v1333
    %v1358 = vmul.f32 %v1345, %v1334
    %v1359 = vmul.f32 %v1349, %v1335
    %v1360 = vmul.f32 %v1349, %v1336
    %v1361 = vmul.f32 %v1353, %v1337
    %v1362 = vmul.f32 %v1353, %v1338
    %v1363 = vadd.f32 %v1299, %v1355
    %v1364 = vadd.f32 %v1300, %v1356
    %v1365 = vadd.f32 %v1301, %v1357
    %v1366 = vadd.f32 %v1302, %v1358
    %v1367 = vadd.f32 %v1303, %v1359
    %v1368 = vadd.f32 %v1304, %v1360
    %v1369 = vadd.f32 %v1305, %v1361
    %v1370 = vadd.f32 %v1306, %v1362
    %1371 = vset.pattern.permute.xlu0 66
    %1372 = vperm.xlu0 %1371, %v1219
    %v1373 = vpop.permute.xlu0 %1372
    %1375 = vset.pattern.permute.xlu0 66
    %1376 = vperm.xlu0 %1375, %v1220
    %v1377 = vpop.permute.xlu0 %1376
    %1379 = vset.pattern.permute.xlu0 66
    %1380 = vperm.xlu0 %1379, %v1221
    %v1381 = vpop.permute.xlu0 %1380
    %1383 = vset.pattern.permute.xlu0 66
    %1384 = vperm.xlu0 %1383, %v1222
    %v1385 = vpop.permute.xlu0 %1384
    %v1387 = vmul.f32 %v1373, %v1206
    %v1388 = vmul.f32 %v1373, %v1207
    %v1389 = vmul.f32 %v1377, %v1208
    %v1390 = vmul.f32 %v1377, %v1209
    %v1391 = vmul.f32 %v1381, %v1210
    %v1392 = vmul.f32 %v1381, %v1211
    %v1393 = vmul.f32 %v1385, %v1212
    %v1394 = vmul.f32 %v1385, %v1213
    %v1395 = vadd.f32 %v1363, %v1387
    %v1396 = vadd.f32 %v1364, %v1388
    %v1397 = vadd.f32 %v1365, %v1389
    %v1398 = vadd.f32 %v1366, %v1390
    %v1399 = vadd.f32 %v1367, %v1391
    %v1400 = vadd.f32 %v1368, %v1392
    %v1401 = vadd.f32 %v1369, %v1393
    %v1402 = vadd.f32 %v1370, %v1394
    %v1403 = vpack.c.bf16 %v1397, %v1395
    %v1404 = vpack.c.bf16 %v1398, %v1396
    %v1405 = vpack.c.bf16 %v1401, %v1399
    %v1406 = vpack.c.bf16 %v1402, %v1400
    %1407 = vset.pattern.permute.xlu0 68
    %1408 = vperm.xlu0 %1407, %v1219
    %v1409 = vpop.permute.xlu0 %1408
    %1411 = vset.pattern.permute.xlu0 68
    %1412 = vperm.xlu0 %1411, %v1220
    %v1413 = vpop.permute.xlu0 %1412
    %1415 = vset.pattern.permute.xlu0 68
    %1416 = vperm.xlu0 %1415, %v1221
    %v1417 = vpop.permute.xlu0 %1416
    %1419 = vset.pattern.permute.xlu0 68
    %1420 = vperm.xlu0 %1419, %v1222
    %v1421 = vpop.permute.xlu0 %1420
    %v1427 = vunpack.c.l.b16 %v1215
    %v1428 = vunpack.c.l.b16 %v1216
    %v1429 = vunpack.c.l.b16 %v1217
    %v1430 = vunpack.c.l.b16 %v1218
    %v1431 = vpack.c.b16 %v1428, %v1427
    %v1432 = vpack.c.b16 %v1430, %v1429
    %v1434 = vsel %vm366, %v1431, 0
    %v1437 = vsel %vm366, %v1432, 0
    %1439 = vmatpush.bf16.msra.mxu0 0
    %1440 = vmatpush.bf16.msra.mxu0 0
    %1441 = vmatpush.bf16.msra.mxu0 0
    %1442 = vmatpush.bf16.msra.mxu0 0
    %1443 = vmatpush.bf16.msra.mxu0 0
    %1444 = vmatpush.bf16.msra.mxu0 0
    %1445 = vmatpush.bf16.msra.mxu0 %v1405
    %1446 = vmatpush.bf16.msra.mxu0 %v1403
    %1447 = vmatmul.bf16.gmra.mxu0 %v1434
    %v1448 = vpop.f32.mrf.mxu0
    %v1449 = vadd.f32 %v1409, %v1448
    %v1450 = vpop.f32.mrf.mxu0
    %v1451 = vadd.f32 %v1413, %v1450
    %1452 = vmatmul.bf16.gmra.mxu0 %v1437
    %v1453 = vpop.f32.mrf.mxu0
    %v1454 = vadd.f32 %v1417, %v1453
    %v1455 = vpop.f32.mrf.mxu0
    %v1456 = vadd.f32 %v1421, %v1455
    %1457 = vdwg.mxu0
    %1458 = vmatpush.bf16.msra.mxu0 0
    %1459 = vmatpush.bf16.msra.mxu0 0
    %1460 = vmatpush.bf16.msra.mxu0 0
    %1461 = vmatpush.bf16.msra.mxu0 0
    %1462 = vmatpush.bf16.msra.mxu0 0
    %1463 = vmatpush.bf16.msra.mxu0 0
    %1464 = vmatpush.bf16.msra.mxu0 %v1406
    %1465 = vmatpush.bf16.msra.mxu0 %v1404
    %1466 = vmatmul.bf16.gmra.mxu0 %v1434
    %v1467 = vpop.f32.mrf.mxu0
    %v1468 = vadd.f32 %v1409, %v1467
    %v1469 = vpop.f32.mrf.mxu0
    %v1470 = vadd.f32 %v1413, %v1469
    %1471 = vmatmul.bf16.gmra.mxu0 %v1437
    %v1472 = vpop.f32.mrf.mxu0
    %v1473 = vadd.f32 %v1417, %v1472
    %v1474 = vpop.f32.mrf.mxu0
    %v1475 = vadd.f32 %v1421, %v1474
    %1476 = vdwg.mxu0
    %v1477 = vmax.f32 %v1449, 0.0
    %v1478 = vmax.f32 %v1468, 0.0
    %v1479 = vmax.f32 %v1451, 0.0
    %v1480 = vmax.f32 %v1470, 0.0
    %v1481 = vmax.f32 %v1454, 0.0
    %v1482 = vmax.f32 %v1473, 0.0
    %v1483 = vmax.f32 %v1456, 0.0
    %v1484 = vmax.f32 %v1475, 0.0
    %v1485 = vpack.c.bf16 %v1479, %v1477
    %v1486 = vpack.c.bf16 %v1480, %v1478
    %v1487 = vpack.c.bf16 %v1483, %v1481
    %v1488 = vpack.c.bf16 %v1484, %v1482
    %1489 = vset.pattern.permute.xlu0 69
    %1490 = vperm.xlu0 %1489, %v1219
    %v1491 = vpop.permute.xlu0 %1490
    %1493 = vset.pattern.permute.xlu0 69
    %1494 = vperm.xlu0 %1493, %v1220
    %v1495 = vpop.permute.xlu0 %1494
    %1497 = vset.pattern.permute.xlu0 69
    %1498 = vperm.xlu0 %1497, %v1221
    %v1499 = vpop.permute.xlu0 %1498
    %1501 = vset.pattern.permute.xlu0 69
    %1502 = vperm.xlu0 %1501, %v1222
    %v1503 = vpop.permute.xlu0 %1502
    %1505 = vrot.lane.b32.xlu0 %v1431, 96
    %v1506 = vpop.permute.xlu0 %1505
    %1507 = vrot.lane.b32.xlu0 %v1432, 96
    %v1508 = vpop.permute.xlu0 %1507
    %v1510 = vsel %vm366, %v1506, 0
    %v1513 = vsel %vm366, %v1508, 0
    %1515 = vmatpush.bf16.msra.mxu0 0
    %1516 = vmatpush.bf16.msra.mxu0 0
    %1517 = vmatpush.bf16.msra.mxu0 0
    %1518 = vmatpush.bf16.msra.mxu0 0
    %1519 = vmatpush.bf16.msra.mxu0 0
    %1520 = vmatpush.bf16.msra.mxu0 0
    %1521 = vmatpush.bf16.msra.mxu0 %v1487
    %1522 = vmatpush.bf16.msra.mxu0 %v1485
    %1523 = vmatmul.bf16.gmra.mxu0 %v1510
    %v1524 = vpop.f32.mrf.mxu0
    %v1525 = vadd.f32 %v1491, %v1524
    %v1526 = vpop.f32.mrf.mxu0
    %v1527 = vadd.f32 %v1495, %v1526
    %1528 = vmatmul.bf16.gmra.mxu0 %v1513
    %v1529 = vpop.f32.mrf.mxu0
    %v1530 = vadd.f32 %v1499, %v1529
    %v1531 = vpop.f32.mrf.mxu0
    %v1532 = vadd.f32 %v1503, %v1531
    %1533 = vdwg.mxu0
    %1534 = vmatpush.bf16.msra.mxu0 0
    %1535 = vmatpush.bf16.msra.mxu0 0
    %1536 = vmatpush.bf16.msra.mxu0 0
    %1537 = vmatpush.bf16.msra.mxu0 0
    %1538 = vmatpush.bf16.msra.mxu0 0
    %1539 = vmatpush.bf16.msra.mxu0 0
    %1540 = vmatpush.bf16.msra.mxu0 %v1488
    %1541 = vmatpush.bf16.msra.mxu0 %v1486
    %1542 = vmatmul.bf16.gmra.mxu0 %v1510
    %v1543 = vpop.f32.mrf.mxu0
    %v1544 = vadd.f32 %v1491, %v1543
    %v1545 = vpop.f32.mrf.mxu0
    %v1546 = vadd.f32 %v1495, %v1545
    %1547 = vmatmul.bf16.gmra.mxu0 %v1513
    %v1548 = vpop.f32.mrf.mxu0
    %v1549 = vadd.f32 %v1499, %v1548
    %v1550 = vpop.f32.mrf.mxu0
    %v1551 = vadd.f32 %v1503, %v1550
    %1552 = vdwg.mxu0
    %v1553 = vadd.f32 %v1525, %v1206
    %v1554 = vadd.f32 %v1544, %v1207
    %v1555 = vadd.f32 %v1527, %v1208
    %v1556 = vadd.f32 %v1546, %v1209
    %v1557 = vadd.f32 %v1530, %v1210
    %v1558 = vadd.f32 %v1549, %v1211
    %v1559 = vadd.f32 %v1532, %v1212
    %v1560 = vadd.f32 %v1551, %v1213
    %v1561 = vmax.f32 %v1553, 0.0
    %v1562 = vmax.f32 %v1554, 0.0
    %v1563 = vmax.f32 %v1555, 0.0
    %v1564 = vmax.f32 %v1556, 0.0
    %v1565 = vmax.f32 %v1557, 0.0
    %v1566 = vmax.f32 %v1558, 0.0
    %v1567 = vmax.f32 %v1559, 0.0
    %v1568 = vmax.f32 %v1560, 0.0
    %s1569 = scalar_lea.vmem [#allocation5], 80
    %v1570 = vld [vmem:[%s1569] sm:$0xf]
    %v1571 = vld [vmem:[%s1569 + $0x4] sm:$0xf]
    %v1572 = vld [vmem:[%s1569 + $0x8] sm:$0xf]
    %v1573 = vld [vmem:[%s1569 + $0xc] sm:$0xf]
    %v1574 = vunpack.c.l.bf16 %v1570
    %v1575 = vunpack.c.l.bf16 %v1571
    %v1576 = vunpack.c.l.bf16 %v1572
    %v1577 = vunpack.c.l.bf16 %v1573
    %1578 = vrot.lane.b32.xlu0 %v1561, 4
    %v1579 = vpop.permute.xlu0 %1578
    %1580 = vrot.lane.b32.xlu0 %v1563, 4
    %v1581 = vpop.permute.xlu0 %1580
    %1582 = vrot.lane.b32.xlu0 %v1565, 4
    %v1583 = vpop.permute.xlu0 %1582
    %1584 = vrot.lane.b32.xlu0 %v1567, 4
    %v1585 = vpop.permute.xlu0 %1584
    %1586 = vrot.lane.b32.xlu0 %v1562, 4
    %v1587 = vpop.permute.xlu0 %1586
    %1588 = vrot.lane.b32.xlu0 %v1564, 4
    %v1589 = vpop.permute.xlu0 %1588
    %1590 = vrot.lane.b32.xlu0 %v1566, 4
    %v1591 = vpop.permute.xlu0 %1590
    %1592 = vrot.lane.b32.xlu0 %v1568, 4
    %v1593 = vpop.permute.xlu0 %1592
    %v1594 = vsel %vm883, %v1579, %v1587
    %v1595 = vsel %vm883, %v1581, %v1589
    %v1596 = vsel %vm883, %v1583, %v1591
    %v1597 = vsel %vm883, %v1585, %v1593
    %v1598 = vsel %vm883, %v1587, %v1579
    %v1599 = vsel %vm883, %v1589, %v1581
    %v1600 = vsel %vm883, %v1591, %v1583
    %v1601 = vsel %vm883, %v1593, %v1585
    %v1602 = vsel %vm54, %v1598, 0.0
    %v1603 = vsel %vm55, %v1594, 0.0
    %v1604 = vsel %vm54, %v1599, 0.0
    %v1605 = vsel %vm55, %v1595, 0.0
    %v1606 = vsel %vm54, %v1600, 0.0
    %v1607 = vsel %vm55, %v1596, 0.0
    %v1608 = vsel %vm54, %v1601, 0.0
    %v1609 = vsel %vm55, %v1597, 0.0
    %1611 = vset.pattern.permute.xlu0 64
    %1612 = vperm.xlu0 %1611, %v1574
    %v1613 = vpop.permute.xlu0 %1612
    %1616 = vset.pattern.permute.xlu0 64
    %1617 = vperm.xlu0 %1616, %v1575
    %v1618 = vpop.permute.xlu0 %1617
    %1621 = vset.pattern.permute.xlu0 64
    %1622 = vperm.xlu0 %1621, %v1576
    %v1623 = vpop.permute.xlu0 %1622
    %1626 = vset.pattern.permute.xlu0 64
    %1627 = vperm.xlu0 %1626, %v1577
    %v1628 = vpop.permute.xlu0 %1627
    %v1630 = vmul.f32 %v1613, %v1602
    %v1631 = vmul.f32 %v1613, %v1603
    %v1632 = vmul.f32 %v1618, %v1604
    %v1633 = vmul.f32 %v1618, %v1605
    %v1634 = vmul.f32 %v1623, %v1606
    %v1635 = vmul.f32 %v1623, %v1607
    %v1636 = vmul.f32 %v1628, %v1608
    %v1637 = vmul.f32 %v1628, %v1609
    %1638 = vset.pattern.permute.xlu0 67
    %1639 = vperm.xlu0 %1638, %v1574
    %v1640 = vpop.permute.xlu0 %1639
    %1642 = vset.pattern.permute.xlu0 67
    %1643 = vperm.xlu0 %1642, %v1575
    %v1644 = vpop.permute.xlu0 %1643
    %1646 = vset.pattern.permute.xlu0 67
    %1647 = vperm.xlu0 %1646, %v1576
    %v1648 = vpop.permute.xlu0 %1647
    %1650 = vset.pattern.permute.xlu0 67
    %1651 = vperm.xlu0 %1650, %v1577
    %v1652 = vpop.permute.xlu0 %1651
    %v1654 = vadd.f32 %v1640, %v1630
    %v1655 = vadd.f32 %v1640, %v1631
    %v1656 = vadd.f32 %v1644, %v1632
    %v1657 = vadd.f32 %v1644, %v1633
    %v1658 = vadd.f32 %v1648, %v1634
    %v1659 = vadd.f32 %v1648, %v1635
    %v1660 = vadd.f32 %v1652, %v1636
    %v1661 = vadd.f32 %v1652, %v1637
    %1662 = vrot.lane.b32.xlu0 %v1561, 2
    %v1663 = vpop.permute.xlu0 %1662
    %1664 = vrot.lane.b32.xlu0 %v1563, 2
    %v1665 = vpop.permute.xlu0 %1664
    %1666 = vrot.lane.b32.xlu0 %v1565, 2
    %v1667 = vpop.permute.xlu0 %1666
    %1668 = vrot.lane.b32.xlu0 %v1567, 2
    %v1669 = vpop.permute.xlu0 %1668
    %1670 = vrot.lane.b32.xlu0 %v1562, 2
    %v1671 = vpop.permute.xlu0 %1670
    %1672 = vrot.lane.b32.xlu0 %v1564, 2
    %v1673 = vpop.permute.xlu0 %1672
    %1674 = vrot.lane.b32.xlu0 %v1566, 2
    %v1675 = vpop.permute.xlu0 %1674
    %1676 = vrot.lane.b32.xlu0 %v1568, 2
    %v1677 = vpop.permute.xlu0 %1676
    %v1678 = vsel %vm170, %v1663, %v1671
    %v1679 = vsel %vm170, %v1665, %v1673
    %v1680 = vsel %vm170, %v1667, %v1675
    %v1681 = vsel %vm170, %v1669, %v1677
    %v1682 = vsel %vm170, %v1671, %v1663
    %v1683 = vsel %vm170, %v1673, %v1665
    %v1684 = vsel %vm170, %v1675, %v1667
    %v1685 = vsel %vm170, %v1677, %v1669
    %v1686 = vsel %vm52, %v1682, 0.0
    %v1687 = vsel %vm53, %v1678, 0.0
    %v1688 = vsel %vm52, %v1683, 0.0
    %v1689 = vsel %vm53, %v1679, 0.0
    %v1690 = vsel %vm52, %v1684, 0.0
    %v1691 = vsel %vm53, %v1680, 0.0
    %v1692 = vsel %vm52, %v1685, 0.0
    %v1693 = vsel %vm53, %v1681, 0.0
    %1694 = vset.pattern.permute.xlu0 65
    %1695 = vperm.xlu0 %1694, %v1574
    %v1696 = vpop.permute.xlu0 %1695
    %1698 = vset.pattern.permute.xlu0 65
    %1699 = vperm.xlu0 %1698, %v1575
    %v1700 = vpop.permute.xlu0 %1699
    %1702 = vset.pattern.permute.xlu0 65
    %1703 = vperm.xlu0 %1702, %v1576
    %v1704 = vpop.permute.xlu0 %1703
    %1706 = vset.pattern.permute.xlu0 65
    %1707 = vperm.xlu0 %1706, %v1577
    %v1708 = vpop.permute.xlu0 %1707
    %v1710 = vmul.f32 %v1696, %v1686
    %v1711 = vmul.f32 %v1696, %v1687
    %v1712 = vmul.f32 %v1700, %v1688
    %v1713 = vmul.f32 %v1700, %v1689
    %v1714 = vmul.f32 %v1704, %v1690
    %v1715 = vmul.f32 %v1704, %v1691
    %v1716 = vmul.f32 %v1708, %v1692
    %v1717 = vmul.f32 %v1708, %v1693
    %v1718 = vadd.f32 %v1654, %v1710
    %v1719 = vadd.f32 %v1655, %v1711
    %v1720 = vadd.f32 %v1656, %v1712
    %v1721 = vadd.f32 %v1657, %v1713
    %v1722 = vadd.f32 %v1658, %v1714
    %v1723 = vadd.f32 %v1659, %v1715
    %v1724 = vadd.f32 %v1660, %v1716
    %v1725 = vadd.f32 %v1661, %v1717
    %1726 = vset.pattern.permute.xlu0 66
    %1727 = vperm.xlu0 %1726, %v1574
    %v1728 = vpop.permute.xlu0 %1727
    %1730 = vset.pattern.permute.xlu0 66
    %1731 = vperm.xlu0 %1730, %v1575
    %v1732 = vpop.permute.xlu0 %1731
    %1734 = vset.pattern.permute.xlu0 66
    %1735 = vperm.xlu0 %1734, %v1576
    %v1736 = vpop.permute.xlu0 %1735
    %1738 = vset.pattern.permute.xlu0 66
    %1739 = vperm.xlu0 %1738, %v1577
    %v1740 = vpop.permute.xlu0 %1739
    %v1742 = vmul.f32 %v1728, %v1561
    %v1743 = vmul.f32 %v1728, %v1562
    %v1744 = vmul.f32 %v1732, %v1563
    %v1745 = vmul.f32 %v1732, %v1564
    %v1746 = vmul.f32 %v1736, %v1565
    %v1747 = vmul.f32 %v1736, %v1566
    %v1748 = vmul.f32 %v1740, %v1567
    %v1749 = vmul.f32 %v1740, %v1568
    %v1750 = vadd.f32 %v1718, %v1742
    %v1751 = vadd.f32 %v1719, %v1743
    %v1752 = vadd.f32 %v1720, %v1744
    %v1753 = vadd.f32 %v1721, %v1745
    %v1754 = vadd.f32 %v1722, %v1746
    %v1755 = vadd.f32 %v1723, %v1747
    %v1756 = vadd.f32 %v1724, %v1748
    %v1757 = vadd.f32 %v1725, %v1749
    %v1758 = vpack.c.bf16 %v1752, %v1750
    %v1759 = vpack.c.bf16 %v1753, %v1751
    %v1760 = vpack.c.bf16 %v1756, %v1754
    %v1761 = vpack.c.bf16 %v1757, %v1755
    %1762 = vset.pattern.permute.xlu0 68
    %1763 = vperm.xlu0 %1762, %v1574
    %v1764 = vpop.permute.xlu0 %1763
    %1766 = vset.pattern.permute.xlu0 68
    %1767 = vperm.xlu0 %1766, %v1575
    %v1768 = vpop.permute.xlu0 %1767
    %1770 = vset.pattern.permute.xlu0 68
    %1771 = vperm.xlu0 %1770, %v1576
    %v1772 = vpop.permute.xlu0 %1771
    %1774 = vset.pattern.permute.xlu0 68
    %1775 = vperm.xlu0 %1774, %v1577
    %v1776 = vpop.permute.xlu0 %1775
    %v1782 = vunpack.c.l.b16 %v1570
    %v1783 = vunpack.c.l.b16 %v1571
    %v1784 = vunpack.c.l.b16 %v1572
    %v1785 = vunpack.c.l.b16 %v1573
    %v1786 = vpack.c.b16 %v1783, %v1782
    %v1787 = vpack.c.b16 %v1785, %v1784
    %v1789 = vsel %vm366, %v1786, 0
    %v1792 = vsel %vm366, %v1787, 0
    %1794 = vmatpush.bf16.msra.mxu0 0
    %1795 = vmatpush.bf16.msra.mxu0 0
    %1796 = vmatpush.bf16.msra.mxu0 0
    %1797 = vmatpush.bf16.msra.mxu0 0
    %1798 = vmatpush.bf16.msra.mxu0 0
    %1799 = vmatpush.bf16.msra.mxu0 0
    %1800 = vmatpush.bf16.msra.mxu0 %v1760
    %1801 = vmatpush.bf16.msra.mxu0 %v1758
    %1802 = vmatmul.bf16.gmra.mxu0 %v1789
    %v1803 = vpop.f32.mrf.mxu0
    %v1804 = vadd.f32 %v1764, %v1803
    %v1805 = vpop.f32.mrf.mxu0
    %v1806 = vadd.f32 %v1768, %v1805
    %1807 = vmatmul.bf16.gmra.mxu0 %v1792
    %v1808 = vpop.f32.mrf.mxu0
    %v1809 = vadd.f32 %v1772, %v1808
    %v1810 = vpop.f32.mrf.mxu0
    %v1811 = vadd.f32 %v1776, %v1810
    %1812 = vdwg.mxu0
    %1813 = vmatpush.bf16.msra.mxu0 0
    %1814 = vmatpush.bf16.msra.mxu0 0
    %1815 = vmatpush.bf16.msra.mxu0 0
    %1816 = vmatpush.bf16.msra.mxu0 0
    %1817 = vmatpush.bf16.msra.mxu0 0
    %1818 = vmatpush.bf16.msra.mxu0 0
    %1819 = vmatpush.bf16.msra.mxu0 %v1761
    %1820 = vmatpush.bf16.msra.mxu0 %v1759
    %1821 = vmatmul.bf16.gmra.mxu0 %v1789
    %v1822 = vpop.f32.mrf.mxu0
    %v1823 = vadd.f32 %v1764, %v1822
    %v1824 = vpop.f32.mrf.mxu0
    %v1825 = vadd.f32 %v1768, %v1824
    %1826 = vmatmul.bf16.gmra.mxu0 %v1792
    %v1827 = vpop.f32.mrf.mxu0
    %v1828 = vadd.f32 %v1772, %v1827
    %v1829 = vpop.f32.mrf.mxu0
    %v1830 = vadd.f32 %v1776, %v1829
    %1831 = vdwg.mxu0
    %v1832 = vmax.f32 %v1804, 0.0
    %v1833 = vmax.f32 %v1823, 0.0
    %v1834 = vmax.f32 %v1806, 0.0
    %v1835 = vmax.f32 %v1825, 0.0
    %v1836 = vmax.f32 %v1809, 0.0
    %v1837 = vmax.f32 %v1828, 0.0
    %v1838 = vmax.f32 %v1811, 0.0
    %v1839 = vmax.f32 %v1830, 0.0
    %v1840 = vpack.c.bf16 %v1834, %v1832
    %v1841 = vpack.c.bf16 %v1835, %v1833
    %v1842 = vpack.c.bf16 %v1838, %v1836
    %v1843 = vpack.c.bf16 %v1839, %v1837
    %1844 = vset.pattern.permute.xlu0 69
    %1845 = vperm.xlu0 %1844, %v1574
    %v1846 = vpop.permute.xlu0 %1845
    %1848 = vset.pattern.permute.xlu0 69
    %1849 = vperm.xlu0 %1848, %v1575
    %v1850 = vpop.permute.xlu0 %1849
    %1852 = vset.pattern.permute.xlu0 69
    %1853 = vperm.xlu0 %1852, %v1576
    %v1854 = vpop.permute.xlu0 %1853
    %1856 = vset.pattern.permute.xlu0 69
    %1857 = vperm.xlu0 %1856, %v1577
    %v1858 = vpop.permute.xlu0 %1857
    %1860 = vrot.lane.b32.xlu0 %v1786, 96
    %v1861 = vpop.permute.xlu0 %1860
    %1862 = vrot.lane.b32.xlu0 %v1787, 96
    %v1863 = vpop.permute.xlu0 %1862
    %v1865 = vsel %vm366, %v1861, 0
    %v1868 = vsel %vm366, %v1863, 0
    %1870 = vmatpush.bf16.msra.mxu0 0
    %1871 = vmatpush.bf16.msra.mxu0 0
    %1872 = vmatpush.bf16.msra.mxu0 0
    %1873 = vmatpush.bf16.msra.mxu0 0
    %1874 = vmatpush.bf16.msra.mxu0 0
    %1875 = vmatpush.bf16.msra.mxu0 0
    %1876 = vmatpush.bf16.msra.mxu0 %v1842
    %1877 = vmatpush.bf16.msra.mxu0 %v1840
    %1878 = vmatmul.bf16.gmra.mxu0 %v1865
    %v1879 = vpop.f32.mrf.mxu0
    %v1880 = vadd.f32 %v1846, %v1879
    %v1881 = vpop.f32.mrf.mxu0
    %v1882 = vadd.f32 %v1850, %v1881
    %1883 = vmatmul.bf16.gmra.mxu0 %v1868
    %v1884 = vpop.f32.mrf.mxu0
    %v1885 = vadd.f32 %v1854, %v1884
    %v1886 = vpop.f32.mrf.mxu0
    %v1887 = vadd.f32 %v1858, %v1886
    %1888 = vdwg.mxu0
    %1889 = vmatpush.bf16.msra.mxu0 0
    %1890 = vmatpush.bf16.msra.mxu0 0
    %1891 = vmatpush.bf16.msra.mxu0 0
    %1892 = vmatpush.bf16.msra.mxu0 0
    %1893 = vmatpush.bf16.msra.mxu0 0
    %1894 = vmatpush.bf16.msra.mxu0 0
    %1895 = vmatpush.bf16.msra.mxu0 %v1843
    %1896 = vmatpush.bf16.msra.mxu0 %v1841
    %1897 = vmatmul.bf16.gmra.mxu0 %v1865
    %v1898 = vpop.f32.mrf.mxu0
    %v1899 = vadd.f32 %v1846, %v1898
    %v1900 = vpop.f32.mrf.mxu0
    %v1901 = vadd.f32 %v1850, %v1900
    %1902 = vmatmul.bf16.gmra.mxu0 %v1868
    %v1903 = vpop.f32.mrf.mxu0
    %v1904 = vadd.f32 %v1854, %v1903
    %v1905 = vpop.f32.mrf.mxu0
    %v1906 = vadd.f32 %v1858, %v1905
    %1907 = vdwg.mxu0
    %v1908 = vadd.f32 %v1880, %v1561
    %v1909 = vadd.f32 %v1899, %v1562
    %v1910 = vadd.f32 %v1882, %v1563
    %v1911 = vadd.f32 %v1901, %v1564
    %v1912 = vadd.f32 %v1885, %v1565
    %v1913 = vadd.f32 %v1904, %v1566
    %v1914 = vadd.f32 %v1887, %v1567
    %v1915 = vadd.f32 %v1906, %v1568
    %v1916 = vmax.f32 %v1908, 0.0
    %v1917 = vmax.f32 %v1909, 0.0
    %v1918 = vmax.f32 %v1910, 0.0
    %v1919 = vmax.f32 %v1911, 0.0
    %v1920 = vmax.f32 %v1912, 0.0
    %v1921 = vmax.f32 %v1913, 0.0
    %v1922 = vmax.f32 %v1914, 0.0
    %v1923 = vmax.f32 %v1915, 0.0
    %v1924 = vadd.f32 %v1206, %v1916
    %v1925 = vadd.f32 %v1207, %v1917
    %v1926 = vadd.f32 %v1208, %v1918
    %v1927 = vadd.f32 %v1209, %v1919
    %v1928 = vadd.f32 %v1210, %v1920
    %v1929 = vadd.f32 %v1211, %v1921
    %v1930 = vadd.f32 %v1212, %v1922
    %v1931 = vadd.f32 %v1213, %v1923
    %1932 = vst [vmem:[#allocation7] sm:$0xff] %v1924
    %1933 = vst [vmem:[#allocation7 + $0x8] sm:$0xff] %v1925
    %1934 = vst [vmem:[#allocation7 + $0x10] sm:$0xff] %v1926
    %1935 = vst [vmem:[#allocation7 + $0x18] sm:$0xff] %v1927
    %1936 = vst [vmem:[#allocation7 + $0x20] sm:$0xff] %v1928
    %1937 = vst [vmem:[#allocation7 + $0x28] sm:$0xff] %v1929
    %1938 = vst [vmem:[#allocation7 + $0x30] sm:$0xff] %v1930
    %1939 = vst [vmem:[#allocation7 + $0x38] sm:$0xff] %v1931
    // Predicated region
    $region18: #{tpu_custom_call.1} parent=1 // pred_check
      _
    $region19: #{tpu_custom_call.1} parent=1 // pred_check_branch
      %1941 = sbr.rel (0) target = $region21
    $region20: #{tpu_custom_call.1} parent=1 // pred_region
      %1943 = vsyncadd [#allocation4], 0
      %s1944 = sshll.u32 [#allocation7], 4
      %s1945 = int_to_ptr.vmem [resolvable:$true] %s1944
      %s1946 = sshll.u32 %s2, 4
      %s1947 = int_to_ptr.hbm [resolvable:$true] %s1946
      %1952 = dma.vmem_to_hbm [thread:$0]  %s1945, 1024, %s1947, [#allocation4], 256, 256, 16
    $region21: #{tpu_custom_call.1} parent=1 // pred_fallthru
      _
    // Predicated region
    $region22: #{tpu_custom_call.1} parent=1 // pred_check
      _
    $region23: #{tpu_custom_call.1} parent=1 // pred_check_branch
      %1954 = sbr.rel (0) target = $region25
    $region24: #{tpu_custom_call.1} parent=1 // pred_region
      %1956 = dma.done [#allocation4], 1024
    $region25: #{tpu_custom_call.1} parent=1 // pred_fallthru
      _
    %1957 = vsyncpa [#allocation3], 1
    %1958 = vsyncpa [#allocation6], 1
    %1959 = vsyncpa [#allocation4], 1

</llo_original>
